<compile_context>
chip_gen: v6e
topology: v6e:2x2x1
jax: 0.10.0
libtpu: 0.0.40
codegen_flags: <defaults>
</compile_context>

<pallas_src>
import jax
import jax.numpy as jnp
from jax.experimental import pallas as pl
from jax.experimental.pallas import tpu as pltpu


def lstm_gather_kernel(idx_ref, x_ref, wih_ref, whh_ref, b_ref, out_ref):
    """Fused input projection + LSTM recurrence + per-batch time gather.

    idx_ref : VMEM (B, 1)        int32  gather index (cur_step + 1) per row
    x_ref   : VMEM (S*B, H)      f32/bf16  embedded tokens, row t*B + b
    wih_ref : VMEM (H, 4H)       f32/bf16  W_ih^T, gate cols (i, f, o, g)
    whh_ref : VMEM (H, 4H)       f32/bf16  W_hh^T, gate cols (i, f, o, g)
    b_ref   : VMEM (1, 4H)       f32       b_ih + b_hh, gate cols (i, f, o, g)
    out_ref : VMEM (B, H)        f32       gathered hidden state
    """
    B, H = out_ref.shape
    S = x_ref.shape[0] // B

    # One big input projection for every step, bias folded in.  This is the
    # only "wide" MXU op; it sits entirely off the serial recurrence chain.
    xproj = jnp.dot(x_ref[...], wih_ref[...],
                    preferred_element_type=jnp.float32) + b_ref[...]   # (S*B, 4H)

    whh = whh_ref[...]                                   # hoisted weight load
    idx_b = jnp.broadcast_to(idx_ref[...], (B, H))       # hoisted broadcast

    h = jnp.zeros((B, H), jnp.float32)
    c = jnp.zeros((B, H), jnp.float32)
    h_sel = jnp.zeros((B, H), jnp.float32)               # rows that never match stay 0

    for t in range(S):                                   # static unroll (small S)
        # Recurrent path: only h @ W_hh^T remains per step.
        gates = xproj[t * B:(t + 1) * B, :] + jnp.dot(
            h.astype(whh.dtype), whh, preferred_element_type=jnp.float32)

        sig = jax.nn.sigmoid(gates[:, :3 * H])           # (B, 3H): i, f, o
        g_g = jnp.tanh(gates[:, 3 * H:])                 # (B, H)
        i_g = sig[:, 0 * H:1 * H]
        f_g = sig[:, 1 * H:2 * H]
        o_g = sig[:, 2 * H:3 * H]

        c = f_g * c + i_g * g_g
        h = o_g * jnp.tanh(c)

        # Register select accumulator instead of predicated masked row stores.
        h_sel = jnp.where(idx_b == t, h, h_sel)

    out_ref[...] = h_sel                                  # single final store


def preprocessor_forward(action_history, cur_step, emb_table,
                         w_ih, w_hh, b_ih, b_hh, *, matmul_dtype=jnp.float32):
    """Matches Preprocessor.forward semantics.

    action_history : (B, T) int32
    cur_step       : (B,)   int32   (valid range [0, T], matching the module)
    emb_table      : (action_dim + 1, H) float32
    w_ih, w_hh     : (4H, H) float32  (PyTorch LSTM layout, gate order i,f,g,o)
    b_ih, b_hh     : (4H,)   float32
    matmul_dtype   : dtype of MXU operands (bf16 recommended on v6e/v7x)
    returns        : (B, H)  float32
    """
    B, T = action_history.shape
    V, H = emb_table.shape
    S = T + 2                                   # both-side pad, exact torch semantics

    # Token ids for steps 0..T+1 (pad token 0 on both sides, +1 shift).
    seq = jnp.pad(action_history.astype(jnp.int32) + 1, ((0, 0), (1, 1)))   # (B, S)

    # Wrapper-side embedding gather (tiny; pure layout plumbing for the kernel):
    # row t*B + b of x holds the step-t embedding of batch element b.
    x = jnp.take(jnp.asarray(emb_table, jnp.float32), seq, axis=0)          # (B, S, H)
    x = jnp.transpose(x, (1, 0, 2)).reshape(S * B, H)

    idx = (cur_step.astype(jnp.int32) + 1).reshape(B, 1)                    # (B, 1)

    # Gate columns permuted (i, f, g, o) -> (i, f, o, g) so activations run on
    # contiguous slabs inside the kernel.
    def reorder_gates(m):
        return jnp.concatenate(
            [m[..., :2 * H], m[..., 3 * H:4 * H], m[..., 2 * H:3 * H]], axis=-1)

    wih = reorder_gates(jnp.asarray(w_ih, jnp.float32).T)                    # (H, 4H)
    whh = reorder_gates(jnp.asarray(w_hh, jnp.float32).T)                    # (H, 4H)
    bias = reorder_gates((jnp.asarray(b_ih, jnp.float32)
                          + jnp.asarray(b_hh, jnp.float32)).reshape(1, 4 * H))

    # Matmul operands only; bias / state / activations stay f32.
    x = x.astype(matmul_dtype)
    wih = wih.astype(matmul_dtype)
    whh = whh.astype(matmul_dtype)

    out = pl.pallas_call(
        lstm_gather_kernel,
        out_shape=jax.ShapeDtypeStruct((B, H), jnp.float32),
        grid_spec=pltpu.PrefetchScalarGridSpec(
            num_scalar_prefetch=0,
            grid=(1,),                                   # single invocation
            in_specs=[
                pl.BlockSpec((B, 1), lambda i: (0, 0)),          # idx
                pl.BlockSpec((S * B, H), lambda i: (0, 0)),      # embedded seq
                pl.BlockSpec((H, 4 * H), lambda i: (0, 0)),      # W_ih^T
                pl.BlockSpec((H, 4 * H), lambda i: (0, 0)),      # W_hh^T
                pl.BlockSpec((1, 4 * H), lambda i: (0, 0)),      # fused bias
            ],
            out_specs=pl.BlockSpec((B, H), lambda i: (0, 0)),
        ),
        compiler_params=pltpu.CompilerParams(
            dimension_semantics=("arbitrary",)),
    )(idx, x, wih, whh, bias)
    return out


def preprocessor_reference(action_history, cur_step, emb_table,
                           w_ih, w_hh, b_ih, b_hh):
    """Pure-JAX reference (mirrors torch nn.LSTM batch_first semantics)."""
    B, T = action_history.shape
    H = emb_table.shape[1]
    seq = jnp.pad(action_history + 1, ((0, 0), (1, 1)))
    x = jnp.take(emb_table, seq, axis=0).astype(jnp.float32)        # (B, S, H)

    def step(carry, x_t):
        h, c = carry
        gates = x_t @ w_ih.T + b_ih + h @ w_hh.T + b_hh
        i_g = jax.nn.sigmoid(gates[:, 0 * H:1 * H])
        f_g = jax.nn.sigmoid(gates[:, 1 * H:2 * H])
        g_g = jnp.tanh(gates[:, 2 * H:3 * H])
        o_g = jax.nn.sigmoid(gates[:, 3 * H:4 * H])
        c = f_g * c + i_g * g_g
        h = o_g * jnp.tanh(c)
        return (h, c), h

    h0 = jnp.zeros((B, H), jnp.float32)
    c0 = jnp.zeros((B, H), jnp.float32)
    _, hs = jax.lax.scan(step, (h0, c0), jnp.swapaxes(x, 0, 1))     # (S, B, H)
    feature = jnp.swapaxes(hs, 0, 1)                                # (B, S, H)
    return feature[jnp.arange(B), cur_step + 1]


if __name__ == "__main__":
    B, T, H = 2, 8, 32
    action_dim = 5  # obs_space['action_history'].nvec[0]

    key = jax.random.PRNGKey(0)
    k1, k2, k3, k4, k5, k6, k7 = jax.random.split(key, 7)

    # Observations (cur_step may be anywhere in [0, T], matching the module).
    action_history = jax.random.randint(k1, (B, T), 0, action_dim, dtype=jnp.int32)
    cur_step = jax.random.randint(k2, (B,), 0, T + 1, dtype=jnp.int32)

    # Deterministic synthetic parameters (shapes match the PyTorch module).
    scale = 1.0 / jnp.sqrt(jnp.float32(H))
    emb_table = jax.random.normal(k3, (action_dim + 1, H), jnp.float32) * 0.5
    w_ih = jax.random.uniform(k4, (4 * H, H), jnp.float32, -scale, scale)
    w_hh = jax.random.uniform(k5, (4 * H, H), jnp.float32, -scale, scale)
    b_ih = jax.random.uniform(k6, (4 * H,), jnp.float32, -scale, scale)
    b_hh = jax.random.uniform(k7, (4 * H,), jnp.float32, -scale, scale)

    ref = preprocessor_reference(action_history, cur_step, emb_table,
                                 w_ih, w_hh, b_ih, b_hh)

    # f32 matmul operands: bit-for-bit safe everywhere, tight tolerance.
    out = preprocessor_forward(action_history, cur_step, emb_table,
                               w_ih, w_hh, b_ih, b_hh,
                               matmul_dtype=jnp.float32)
    out = jax.block_until_ready(out)
    assert out.shape == (B, H)
    assert jnp.allclose(out, ref, atol=1e-4, rtol=1e-4), (
        f"f32 max abs err = {jnp.max(jnp.abs(out - ref))}")

    # bf16 matmul operands (v6e/v7x lever): f32 accumulation/state, looser tol.
    out_bf16 = preprocessor_forward(action_history, cur_step, emb_table,
                                    w_ih, w_hh, b_ih, b_hh,
                                    matmul_dtype=jnp.bfloat16)
    out_bf16 = jax.block_until_ready(out_bf16)
    assert jnp.allclose(out_bf16, ref, atol=5e-2, rtol=5e-2), (
        f"bf16 max abs err = {jnp.max(jnp.abs(out_bf16 - ref))}")

    print("KERNEL_OK")
</pallas_src>

<mosaic_0001>
module attributes {stable_mosaic.version = 11 : i64} {
  func.func @lstm_gather_kernel(%arg0: i32, %arg1: memref<2x1xi32, #tpu.memory_space<vmem>>, %arg2: memref<20x32xf32, #tpu.memory_space<vmem>>, %arg3: memref<32x128xf32, #tpu.memory_space<vmem>>, %arg4: memref<32x128xf32, #tpu.memory_space<vmem>>, %arg5: memref<1x128xf32, #tpu.memory_space<vmem>>, %arg6: memref<2x32xf32, #tpu.memory_space<vmem>>) attributes {dimension_semantics = [#tpu.dimension_semantics<arbitrary>], iteration_bounds = array<i64: 1>, scalar_prefetch = 0 : i64, scratch_operands = 0 : i64, tpu.core_type = #tpu.core_type<tc>, window_params = [{pipeline_mode = #tpu.pipeline_mode<synchronous>, transform_indices = @transform_0, window_bounds = array<i64: 2, 1>}, {pipeline_mode = #tpu.pipeline_mode<synchronous>, transform_indices = @transform_1, window_bounds = array<i64: 20, 32>}, {pipeline_mode = #tpu.pipeline_mode<synchronous>, transform_indices = @transform_2, window_bounds = array<i64: 32, 128>}, {pipeline_mode = #tpu.pipeline_mode<synchronous>, transform_indices = @transform_3, window_bounds = array<i64: 32, 128>}, {pipeline_mode = #tpu.pipeline_mode<synchronous>, transform_indices = @transform_4, window_bounds = array<i64: 1, 128>}, {pipeline_mode = #tpu.pipeline_mode<synchronous>, transform_indices = @transform_5, window_bounds = array<i64: 2, 32>}]} {
    %c0 = arith.constant 0 : index
    %c0_0 = arith.constant 0 : index
    %0 = vector.load %arg2[%c0, %c0_0] : memref<20x32xf32, #tpu.memory_space<vmem>>, vector<20x32xf32>
    %c0_1 = arith.constant 0 : index
    %c0_2 = arith.constant 0 : index
    %1 = vector.load %arg3[%c0_1, %c0_2] : memref<32x128xf32, #tpu.memory_space<vmem>>, vector<32x128xf32>
    %cst = arith.constant dense<0.000000e+00> : vector<20x128xf32>
    %2 = tpu.matmul %0, %1, %cst {dimension_numbers = #tpu.dot_dimension_numbers<[1], [0], [0], [1], [0, 0, 1, 1], [], []>} : vector<20x32xf32>, vector<32x128xf32>, vector<20x128xf32> -> vector<20x128xf32>
    %c0_3 = arith.constant 0 : index
    %c0_4 = arith.constant 0 : index
    %3 = vector.load %arg5[%c0_3, %c0_4] : memref<1x128xf32, #tpu.memory_space<vmem>>, vector<1x128xf32>
    %4 = vector.broadcast %3 : vector<1x128xf32> to vector<20x128xf32>
    %5 = arith.addf %2, %4 : vector<20x128xf32>
    %c0_5 = arith.constant 0 : index
    %c0_6 = arith.constant 0 : index
    %6 = vector.load %arg4[%c0_5, %c0_6] : memref<32x128xf32, #tpu.memory_space<vmem>>, vector<32x128xf32>
    %c0_7 = arith.constant 0 : index
    %c0_8 = arith.constant 0 : index
    %7 = vector.load %arg1[%c0_7, %c0_8] : memref<2x1xi32, #tpu.memory_space<vmem>>, vector<2x1xi32>
    %8 = vector.shape_cast %7 : vector<2x1xi32> to vector<2x1xi32>
    %9 = vector.broadcast %8 : vector<2x1xi32> to vector<2x32xi32>
    %cst_9 = arith.constant 0.000000e+00 : f32
    %10 = vector.broadcast %cst_9 : f32 to vector<2x32xf32>
    %cst_10 = arith.constant 0.000000e+00 : f32
    %11 = vector.broadcast %cst_10 : f32 to vector<2x32xf32>
    %cst_11 = arith.constant 0.000000e+00 : f32
    %12 = vector.broadcast %cst_11 : f32 to vector<2x32xf32>
    %13 = vector.extract_strided_slice %5 {offsets = [0, 0], sizes = [2, 128], strides = [1, 1]} : vector<20x128xf32> to vector<2x128xf32>
    %cst_12 = arith.constant dense<0.000000e+00> : vector<2x128xf32>
    %14 = tpu.matmul %10, %6, %cst_12 {dimension_numbers = #tpu.dot_dimension_numbers<[1], [0], [0], [1], [0, 0, 1, 1], [], []>} : vector<2x32xf32>, vector<32x128xf32>, vector<2x128xf32> -> vector<2x128xf32>
    %15 = arith.addf %13, %14 : vector<2x128xf32>
    %16 = vector.extract_strided_slice %15 {offsets = [0, 0], sizes = [2, 96], strides = [1, 1]} : vector<2x128xf32> to vector<2x96xf32>
    %17 = arith.negf %16 : vector<2x96xf32>
    %18 = math.exp %17 : vector<2x96xf32>
    %cst_13 = arith.constant 1.000000e+00 : f32
    %19 = vector.broadcast %cst_13 : f32 to vector<2x96xf32>
    %20 = arith.addf %19, %18 : vector<2x96xf32>
    %21 = arith.divf %19, %20 : vector<2x96xf32>
    %22 = vector.extract_strided_slice %15 {offsets = [0, 96], sizes = [2, 32], strides = [1, 1]} : vector<2x128xf32> to vector<2x32xf32>
    %23 = math.tanh %22 : vector<2x32xf32>
    %24 = vector.extract_strided_slice %21 {offsets = [0, 0], sizes = [2, 32], strides = [1, 1]} : vector<2x96xf32> to vector<2x32xf32>
    %25 = vector.extract_strided_slice %21 {offsets = [0, 32], sizes = [2, 32], strides = [1, 1]} : vector<2x96xf32> to vector<2x32xf32>
    %26 = vector.extract_strided_slice %21 {offsets = [0, 64], sizes = [2, 32], strides = [1, 1]} : vector<2x96xf32> to vector<2x32xf32>
    %27 = arith.mulf %25, %11 : vector<2x32xf32>
    %28 = arith.mulf %24, %23 : vector<2x32xf32>
    %29 = arith.addf %27, %28 : vector<2x32xf32>
    %30 = math.tanh %29 : vector<2x32xf32>
    %31 = arith.mulf %26, %30 : vector<2x32xf32>
    %c0_i32 = arith.constant 0 : i32
    %32 = vector.broadcast %c0_i32 : i32 to vector<2x32xi32>
    %33 = arith.cmpi eq, %9, %32 : vector<2x32xi32>
    %34 = arith.select %33, %31, %12 : vector<2x32xi1>, vector<2x32xf32>
    %35 = vector.extract_strided_slice %5 {offsets = [2, 0], sizes = [2, 128], strides = [1, 1]} : vector<20x128xf32> to vector<2x128xf32>
    %cst_14 = arith.constant dense<0.000000e+00> : vector<2x128xf32>
    %36 = tpu.matmul %31, %6, %cst_14 {dimension_numbers = #tpu.dot_dimension_numbers<[1], [0], [0], [1], [0, 0, 1, 1], [], []>} : vector<2x32xf32>, vector<32x128xf32>, vector<2x128xf32> -> vector<2x128xf32>
    %37 = arith.addf %35, %36 : vector<2x128xf32>
    %38 = vector.extract_strided_slice %37 {offsets = [0, 0], sizes = [2, 96], strides = [1, 1]} : vector<2x128xf32> to vector<2x96xf32>
    %39 = arith.negf %38 : vector<2x96xf32>
    %40 = math.exp %39 : vector<2x96xf32>
    %cst_15 = arith.constant 1.000000e+00 : f32
    %41 = vector.broadcast %cst_15 : f32 to vector<2x96xf32>
    %42 = arith.addf %41, %40 : vector<2x96xf32>
    %43 = arith.divf %41, %42 : vector<2x96xf32>
    %44 = vector.extract_strided_slice %37 {offsets = [0, 96], sizes = [2, 32], strides = [1, 1]} : vector<2x128xf32> to vector<2x32xf32>
    %45 = math.tanh %44 : vector<2x32xf32>
    %46 = vector.extract_strided_slice %43 {offsets = [0, 0], sizes = [2, 32], strides = [1, 1]} : vector<2x96xf32> to vector<2x32xf32>
    %47 = vector.extract_strided_slice %43 {offsets = [0, 32], sizes = [2, 32], strides = [1, 1]} : vector<2x96xf32> to vector<2x32xf32>
    %48 = vector.extract_strided_slice %43 {offsets = [0, 64], sizes = [2, 32], strides = [1, 1]} : vector<2x96xf32> to vector<2x32xf32>
    %49 = arith.mulf %47, %29 : vector<2x32xf32>
    %50 = arith.mulf %46, %45 : vector<2x32xf32>
    %51 = arith.addf %49, %50 : vector<2x32xf32>
    %52 = math.tanh %51 : vector<2x32xf32>
    %53 = arith.mulf %48, %52 : vector<2x32xf32>
    %c1_i32 = arith.constant 1 : i32
    %54 = vector.broadcast %c1_i32 : i32 to vector<2x32xi32>
    %55 = arith.cmpi eq, %9, %54 : vector<2x32xi32>
    %56 = arith.select %55, %53, %34 : vector<2x32xi1>, vector<2x32xf32>
    %57 = vector.extract_strided_slice %5 {offsets = [4, 0], sizes = [2, 128], strides = [1, 1]} : vector<20x128xf32> to vector<2x128xf32>
    %cst_16 = arith.constant dense<0.000000e+00> : vector<2x128xf32>
    %58 = tpu.matmul %53, %6, %cst_16 {dimension_numbers = #tpu.dot_dimension_numbers<[1], [0], [0], [1], [0, 0, 1, 1], [], []>} : vector<2x32xf32>, vector<32x128xf32>, vector<2x128xf32> -> vector<2x128xf32>
    %59 = arith.addf %57, %58 : vector<2x128xf32>
    %60 = vector.extract_strided_slice %59 {offsets = [0, 0], sizes = [2, 96], strides = [1, 1]} : vector<2x128xf32> to vector<2x96xf32>
    %61 = arith.negf %60 : vector<2x96xf32>
    %62 = math.exp %61 : vector<2x96xf32>
    %cst_17 = arith.constant 1.000000e+00 : f32
    %63 = vector.broadcast %cst_17 : f32 to vector<2x96xf32>
    %64 = arith.addf %63, %62 : vector<2x96xf32>
    %65 = arith.divf %63, %64 : vector<2x96xf32>
    %66 = vector.extract_strided_slice %59 {offsets = [0, 96], sizes = [2, 32], strides = [1, 1]} : vector<2x128xf32> to vector<2x32xf32>
    %67 = math.tanh %66 : vector<2x32xf32>
    %68 = vector.extract_strided_slice %65 {offsets = [0, 0], sizes = [2, 32], strides = [1, 1]} : vector<2x96xf32> to vector<2x32xf32>
    %69 = vector.extract_strided_slice %65 {offsets = [0, 32], sizes = [2, 32], strides = [1, 1]} : vector<2x96xf32> to vector<2x32xf32>
    %70 = vector.extract_strided_slice %65 {offsets = [0, 64], sizes = [2, 32], strides = [1, 1]} : vector<2x96xf32> to vector<2x32xf32>
    %71 = arith.mulf %69, %51 : vector<2x32xf32>
    %72 = arith.mulf %68, %67 : vector<2x32xf32>
    %73 = arith.addf %71, %72 : vector<2x32xf32>
    %74 = math.tanh %73 : vector<2x32xf32>
    %75 = arith.mulf %70, %74 : vector<2x32xf32>
    %c2_i32 = arith.constant 2 : i32
    %76 = vector.broadcast %c2_i32 : i32 to vector<2x32xi32>
    %77 = arith.cmpi eq, %9, %76 : vector<2x32xi32>
    %78 = arith.select %77, %75, %56 : vector<2x32xi1>, vector<2x32xf32>
    %79 = vector.extract_strided_slice %5 {offsets = [6, 0], sizes = [2, 128], strides = [1, 1]} : vector<20x128xf32> to vector<2x128xf32>
    %cst_18 = arith.constant dense<0.000000e+00> : vector<2x128xf32>
    %80 = tpu.matmul %75, %6, %cst_18 {dimension_numbers = #tpu.dot_dimension_numbers<[1], [0], [0], [1], [0, 0, 1, 1], [], []>} : vector<2x32xf32>, vector<32x128xf32>, vector<2x128xf32> -> vector<2x128xf32>
    %81 = arith.addf %79, %80 : vector<2x128xf32>
    %82 = vector.extract_strided_slice %81 {offsets = [0, 0], sizes = [2, 96], strides = [1, 1]} : vector<2x128xf32> to vector<2x96xf32>
    %83 = arith.negf %82 : vector<2x96xf32>
    %84 = math.exp %83 : vector<2x96xf32>
    %cst_19 = arith.constant 1.000000e+00 : f32
    %85 = vector.broadcast %cst_19 : f32 to vector<2x96xf32>
    %86 = arith.addf %85, %84 : vector<2x96xf32>
    %87 = arith.divf %85, %86 : vector<2x96xf32>
    %88 = vector.extract_strided_slice %81 {offsets = [0, 96], sizes = [2, 32], strides = [1, 1]} : vector<2x128xf32> to vector<2x32xf32>
    %89 = math.tanh %88 : vector<2x32xf32>
    %90 = vector.extract_strided_slice %87 {offsets = [0, 0], sizes = [2, 32], strides = [1, 1]} : vector<2x96xf32> to vector<2x32xf32>
    %91 = vector.extract_strided_slice %87 {offsets = [0, 32], sizes = [2, 32], strides = [1, 1]} : vector<2x96xf32> to vector<2x32xf32>
    %92 = vector.extract_strided_slice %87 {offsets = [0, 64], sizes = [2, 32], strides = [1, 1]} : vector<2x96xf32> to vector<2x32xf32>
    %93 = arith.mulf %91, %73 : vector<2x32xf32>
    %94 = arith.mulf %90, %89 : vector<2x32xf32>
    %95 = arith.addf %93, %94 : vector<2x32xf32>
    %96 = math.tanh %95 : vector<2x32xf32>
    %97 = arith.mulf %92, %96 : vector<2x32xf32>
    %c3_i32 = arith.constant 3 : i32
    %98 = vector.broadcast %c3_i32 : i32 to vector<2x32xi32>
    %99 = arith.cmpi eq, %9, %98 : vector<2x32xi32>
    %100 = arith.select %99, %97, %78 : vector<2x32xi1>, vector<2x32xf32>
    %101 = vector.extract_strided_slice %5 {offsets = [8, 0], sizes = [2, 128], strides = [1, 1]} : vector<20x128xf32> to vector<2x128xf32>
    %cst_20 = arith.constant dense<0.000000e+00> : vector<2x128xf32>
    %102 = tpu.matmul %97, %6, %cst_20 {dimension_numbers = #tpu.dot_dimension_numbers<[1], [0], [0], [1], [0, 0, 1, 1], [], []>} : vector<2x32xf32>, vector<32x128xf32>, vector<2x128xf32> -> vector<2x128xf32>
    %103 = arith.addf %101, %102 : vector<2x128xf32>
    %104 = vector.extract_strided_slice %103 {offsets = [0, 0], sizes = [2, 96], strides = [1, 1]} : vector<2x128xf32> to vector<2x96xf32>
    %105 = arith.negf %104 : vector<2x96xf32>
    %106 = math.exp %105 : vector<2x96xf32>
    %cst_21 = arith.constant 1.000000e+00 : f32
    %107 = vector.broadcast %cst_21 : f32 to vector<2x96xf32>
    %108 = arith.addf %107, %106 : vector<2x96xf32>
    %109 = arith.divf %107, %108 : vector<2x96xf32>
    %110 = vector.extract_strided_slice %103 {offsets = [0, 96], sizes = [2, 32], strides = [1, 1]} : vector<2x128xf32> to vector<2x32xf32>
    %111 = math.tanh %110 : vector<2x32xf32>
    %112 = vector.extract_strided_slice %109 {offsets = [0, 0], sizes = [2, 32], strides = [1, 1]} : vector<2x96xf32> to vector<2x32xf32>
    %113 = vector.extract_strided_slice %109 {offsets = [0, 32], sizes = [2, 32], strides = [1, 1]} : vector<2x96xf32> to vector<2x32xf32>
    %114 = vector.extract_strided_slice %109 {offsets = [0, 64], sizes = [2, 32], strides = [1, 1]} : vector<2x96xf32> to vector<2x32xf32>
    %115 = arith.mulf %113, %95 : vector<2x32xf32>
    %116 = arith.mulf %112, %111 : vector<2x32xf32>
    %117 = arith.addf %115, %116 : vector<2x32xf32>
    %118 = math.tanh %117 : vector<2x32xf32>
    %119 = arith.mulf %114, %118 : vector<2x32xf32>
    %c4_i32 = arith.constant 4 : i32
    %120 = vector.broadcast %c4_i32 : i32 to vector<2x32xi32>
    %121 = arith.cmpi eq, %9, %120 : vector<2x32xi32>
    %122 = arith.select %121, %119, %100 : vector<2x32xi1>, vector<2x32xf32>
    %123 = vector.extract_strided_slice %5 {offsets = [10, 0], sizes = [2, 128], strides = [1, 1]} : vector<20x128xf32> to vector<2x128xf32>
    %cst_22 = arith.constant dense<0.000000e+00> : vector<2x128xf32>
    %124 = tpu.matmul %119, %6, %cst_22 {dimension_numbers = #tpu.dot_dimension_numbers<[1], [0], [0], [1], [0, 0, 1, 1], [], []>} : vector<2x32xf32>, vector<32x128xf32>, vector<2x128xf32> -> vector<2x128xf32>
    %125 = arith.addf %123, %124 : vector<2x128xf32>
    %126 = vector.extract_strided_slice %125 {offsets = [0, 0], sizes = [2, 96], strides = [1, 1]} : vector<2x128xf32> to vector<2x96xf32>
    %127 = arith.negf %126 : vector<2x96xf32>
    %128 = math.exp %127 : vector<2x96xf32>
    %cst_23 = arith.constant 1.000000e+00 : f32
    %129 = vector.broadcast %cst_23 : f32 to vector<2x96xf32>
    %130 = arith.addf %129, %128 : vector<2x96xf32>
    %131 = arith.divf %129, %130 : vector<2x96xf32>
    %132 = vector.extract_strided_slice %125 {offsets = [0, 96], sizes = [2, 32], strides = [1, 1]} : vector<2x128xf32> to vector<2x32xf32>
    %133 = math.tanh %132 : vector<2x32xf32>
    %134 = vector.extract_strided_slice %131 {offsets = [0, 0], sizes = [2, 32], strides = [1, 1]} : vector<2x96xf32> to vector<2x32xf32>
    %135 = vector.extract_strided_slice %131 {offsets = [0, 32], sizes = [2, 32], strides = [1, 1]} : vector<2x96xf32> to vector<2x32xf32>
    %136 = vector.extract_strided_slice %131 {offsets = [0, 64], sizes = [2, 32], strides = [1, 1]} : vector<2x96xf32> to vector<2x32xf32>
    %137 = arith.mulf %135, %117 : vector<2x32xf32>
    %138 = arith.mulf %134, %133 : vector<2x32xf32>
    %139 = arith.addf %137, %138 : vector<2x32xf32>
    %140 = math.tanh %139 : vector<2x32xf32>
    %141 = arith.mulf %136, %140 : vector<2x32xf32>
    %c5_i32 = arith.constant 5 : i32
    %142 = vector.broadcast %c5_i32 : i32 to vector<2x32xi32>
    %143 = arith.cmpi eq, %9, %142 : vector<2x32xi32>
    %144 = arith.select %143, %141, %122 : vector<2x32xi1>, vector<2x32xf32>
    %145 = vector.extract_strided_slice %5 {offsets = [12, 0], sizes = [2, 128], strides = [1, 1]} : vector<20x128xf32> to vector<2x128xf32>
    %cst_24 = arith.constant dense<0.000000e+00> : vector<2x128xf32>
    %146 = tpu.matmul %141, %6, %cst_24 {dimension_numbers = #tpu.dot_dimension_numbers<[1], [0], [0], [1], [0, 0, 1, 1], [], []>} : vector<2x32xf32>, vector<32x128xf32>, vector<2x128xf32> -> vector<2x128xf32>
    %147 = arith.addf %145, %146 : vector<2x128xf32>
    %148 = vector.extract_strided_slice %147 {offsets = [0, 0], sizes = [2, 96], strides = [1, 1]} : vector<2x128xf32> to vector<2x96xf32>
    %149 = arith.negf %148 : vector<2x96xf32>
    %150 = math.exp %149 : vector<2x96xf32>
    %cst_25 = arith.constant 1.000000e+00 : f32
    %151 = vector.broadcast %cst_25 : f32 to vector<2x96xf32>
    %152 = arith.addf %151, %150 : vector<2x96xf32>
    %153 = arith.divf %151, %152 : vector<2x96xf32>
    %154 = vector.extract_strided_slice %147 {offsets = [0, 96], sizes = [2, 32], strides = [1, 1]} : vector<2x128xf32> to vector<2x32xf32>
    %155 = math.tanh %154 : vector<2x32xf32>
    %156 = vector.extract_strided_slice %153 {offsets = [0, 0], sizes = [2, 32], strides = [1, 1]} : vector<2x96xf32> to vector<2x32xf32>
    %157 = vector.extract_strided_slice %153 {offsets = [0, 32], sizes = [2, 32], strides = [1, 1]} : vector<2x96xf32> to vector<2x32xf32>
    %158 = vector.extract_strided_slice %153 {offsets = [0, 64], sizes = [2, 32], strides = [1, 1]} : vector<2x96xf32> to vector<2x32xf32>
    %159 = arith.mulf %157, %139 : vector<2x32xf32>
    %160 = arith.mulf %156, %155 : vector<2x32xf32>
    %161 = arith.addf %159, %160 : vector<2x32xf32>
    %162 = math.tanh %161 : vector<2x32xf32>
    %163 = arith.mulf %158, %162 : vector<2x32xf32>
    %c6_i32 = arith.constant 6 : i32
    %164 = vector.broadcast %c6_i32 : i32 to vector<2x32xi32>
    %165 = arith.cmpi eq, %9, %164 : vector<2x32xi32>
    %166 = arith.select %165, %163, %144 : vector<2x32xi1>, vector<2x32xf32>
    %167 = vector.extract_strided_slice %5 {offsets = [14, 0], sizes = [2, 128], strides = [1, 1]} : vector<20x128xf32> to vector<2x128xf32>
    %cst_26 = arith.constant dense<0.000000e+00> : vector<2x128xf32>
    %168 = tpu.matmul %163, %6, %cst_26 {dimension_numbers = #tpu.dot_dimension_numbers<[1], [0], [0], [1], [0, 0, 1, 1], [], []>} : vector<2x32xf32>, vector<32x128xf32>, vector<2x128xf32> -> vector<2x128xf32>
    %169 = arith.addf %167, %168 : vector<2x128xf32>
    %170 = vector.extract_strided_slice %169 {offsets = [0, 0], sizes = [2, 96], strides = [1, 1]} : vector<2x128xf32> to vector<2x96xf32>
    %171 = arith.negf %170 : vector<2x96xf32>
    %172 = math.exp %171 : vector<2x96xf32>
    %cst_27 = arith.constant 1.000000e+00 : f32
    %173 = vector.broadcast %cst_27 : f32 to vector<2x96xf32>
    %174 = arith.addf %173, %172 : vector<2x96xf32>
    %175 = arith.divf %173, %174 : vector<2x96xf32>
    %176 = vector.extract_strided_slice %169 {offsets = [0, 96], sizes = [2, 32], strides = [1, 1]} : vector<2x128xf32> to vector<2x32xf32>
    %177 = math.tanh %176 : vector<2x32xf32>
    %178 = vector.extract_strided_slice %175 {offsets = [0, 0], sizes = [2, 32], strides = [1, 1]} : vector<2x96xf32> to vector<2x32xf32>
    %179 = vector.extract_strided_slice %175 {offsets = [0, 32], sizes = [2, 32], strides = [1, 1]} : vector<2x96xf32> to vector<2x32xf32>
    %180 = vector.extract_strided_slice %175 {offsets = [0, 64], sizes = [2, 32], strides = [1, 1]} : vector<2x96xf32> to vector<2x32xf32>
    %181 = arith.mulf %179, %161 : vector<2x32xf32>
    %182 = arith.mulf %178, %177 : vector<2x32xf32>
    %183 = arith.addf %181, %182 : vector<2x32xf32>
    %184 = math.tanh %183 : vector<2x32xf32>
    %185 = arith.mulf %180, %184 : vector<2x32xf32>
    %c7_i32 = arith.constant 7 : i32
    %186 = vector.broadcast %c7_i32 : i32 to vector<2x32xi32>
    %187 = arith.cmpi eq, %9, %186 : vector<2x32xi32>
    %188 = arith.select %187, %185, %166 : vector<2x32xi1>, vector<2x32xf32>
    %189 = vector.extract_strided_slice %5 {offsets = [16, 0], sizes = [2, 128], strides = [1, 1]} : vector<20x128xf32> to vector<2x128xf32>
    %cst_28 = arith.constant dense<0.000000e+00> : vector<2x128xf32>
    %190 = tpu.matmul %185, %6, %cst_28 {dimension_numbers = #tpu.dot_dimension_numbers<[1], [0], [0], [1], [0, 0, 1, 1], [], []>} : vector<2x32xf32>, vector<32x128xf32>, vector<2x128xf32> -> vector<2x128xf32>
    %191 = arith.addf %189, %190 : vector<2x128xf32>
    %192 = vector.extract_strided_slice %191 {offsets = [0, 0], sizes = [2, 96], strides = [1, 1]} : vector<2x128xf32> to vector<2x96xf32>
    %193 = arith.negf %192 : vector<2x96xf32>
    %194 = math.exp %193 : vector<2x96xf32>
    %cst_29 = arith.constant 1.000000e+00 : f32
    %195 = vector.broadcast %cst_29 : f32 to vector<2x96xf32>
    %196 = arith.addf %195, %194 : vector<2x96xf32>
    %197 = arith.divf %195, %196 : vector<2x96xf32>
    %198 = vector.extract_strided_slice %191 {offsets = [0, 96], sizes = [2, 32], strides = [1, 1]} : vector<2x128xf32> to vector<2x32xf32>
    %199 = math.tanh %198 : vector<2x32xf32>
    %200 = vector.extract_strided_slice %197 {offsets = [0, 0], sizes = [2, 32], strides = [1, 1]} : vector<2x96xf32> to vector<2x32xf32>
    %201 = vector.extract_strided_slice %197 {offsets = [0, 32], sizes = [2, 32], strides = [1, 1]} : vector<2x96xf32> to vector<2x32xf32>
    %202 = vector.extract_strided_slice %197 {offsets = [0, 64], sizes = [2, 32], strides = [1, 1]} : vector<2x96xf32> to vector<2x32xf32>
    %203 = arith.mulf %201, %183 : vector<2x32xf32>
    %204 = arith.mulf %200, %199 : vector<2x32xf32>
    %205 = arith.addf %203, %204 : vector<2x32xf32>
    %206 = math.tanh %205 : vector<2x32xf32>
    %207 = arith.mulf %202, %206 : vector<2x32xf32>
    %c8_i32 = arith.constant 8 : i32
    %208 = vector.broadcast %c8_i32 : i32 to vector<2x32xi32>
    %209 = arith.cmpi eq, %9, %208 : vector<2x32xi32>
    %210 = arith.select %209, %207, %188 : vector<2x32xi1>, vector<2x32xf32>
    %211 = vector.extract_strided_slice %5 {offsets = [18, 0], sizes = [2, 128], strides = [1, 1]} : vector<20x128xf32> to vector<2x128xf32>
    %cst_30 = arith.constant dense<0.000000e+00> : vector<2x128xf32>
    %212 = tpu.matmul %207, %6, %cst_30 {dimension_numbers = #tpu.dot_dimension_numbers<[1], [0], [0], [1], [0, 0, 1, 1], [], []>} : vector<2x32xf32>, vector<32x128xf32>, vector<2x128xf32> -> vector<2x128xf32>
    %213 = arith.addf %211, %212 : vector<2x128xf32>
    %214 = vector.extract_strided_slice %213 {offsets = [0, 0], sizes = [2, 96], strides = [1, 1]} : vector<2x128xf32> to vector<2x96xf32>
    %215 = arith.negf %214 : vector<2x96xf32>
    %216 = math.exp %215 : vector<2x96xf32>
    %cst_31 = arith.constant 1.000000e+00 : f32
    %217 = vector.broadcast %cst_31 : f32 to vector<2x96xf32>
    %218 = arith.addf %217, %216 : vector<2x96xf32>
    %219 = arith.divf %217, %218 : vector<2x96xf32>
    %220 = vector.extract_strided_slice %213 {offsets = [0, 96], sizes = [2, 32], strides = [1, 1]} : vector<2x128xf32> to vector<2x32xf32>
    %221 = math.tanh %220 : vector<2x32xf32>
    %222 = vector.extract_strided_slice %219 {offsets = [0, 0], sizes = [2, 32], strides = [1, 1]} : vector<2x96xf32> to vector<2x32xf32>
    %223 = vector.extract_strided_slice %219 {offsets = [0, 32], sizes = [2, 32], strides = [1, 1]} : vector<2x96xf32> to vector<2x32xf32>
    %224 = vector.extract_strided_slice %219 {offsets = [0, 64], sizes = [2, 32], strides = [1, 1]} : vector<2x96xf32> to vector<2x32xf32>
    %225 = arith.mulf %223, %205 : vector<2x32xf32>
    %226 = arith.mulf %222, %221 : vector<2x32xf32>
    %227 = arith.addf %225, %226 : vector<2x32xf32>
    %228 = math.tanh %227 : vector<2x32xf32>
    %229 = arith.mulf %224, %228 : vector<2x32xf32>
    %c9_i32 = arith.constant 9 : i32
    %230 = vector.broadcast %c9_i32 : i32 to vector<2x32xi32>
    %231 = arith.cmpi eq, %9, %230 : vector<2x32xi32>
    %232 = arith.select %231, %229, %210 : vector<2x32xi1>, vector<2x32xf32>
    %c0_32 = arith.constant 0 : index
    %c0_33 = arith.constant 0 : index
    %233 = vector.load %arg6[%c0_32, %c0_33] : memref<2x32xf32, #tpu.memory_space<vmem>>, vector<2x32xf32>
    tpu.vector_store %arg6[%c0_32, %c0_33], %232 {strides = array<i32>} : memref<2x32xf32, #tpu.memory_space<vmem>>, vector<2x32xf32>,
    return
  }
  func.func @transform_0(%arg0: i32) -> (i32, i32) {
    %c0_i32 = arith.constant 0 : i32
    %c0_i32_0 = arith.constant 0 : i32
    %c0_i32_1 = arith.constant 0 : i32
    return %c0_i32, %c0_i32_0 : i32, i32
  }
  func.func @transform_1(%arg0: i32) -> (i32, i32) {
    %c0_i32 = arith.constant 0 : i32
    %c0_i32_0 = arith.constant 0 : i32
    %c0_i32_1 = arith.constant 0 : i32
    return %c0_i32, %c0_i32_0 : i32, i32
  }
  func.func @transform_2(%arg0: i32) -> (i32, i32) {
    %c0_i32 = arith.constant 0 : i32
    %c0_i32_0 = arith.constant 0 : i32
    %c0_i32_1 = arith.constant 0 : i32
    return %c0_i32, %c0_i32_0 : i32, i32
  }
  func.func @transform_3(%arg0: i32) -> (i32, i32) {
    %c0_i32 = arith.constant 0 : i32
    %c0_i32_0 = arith.constant 0 : i32
    %c0_i32_1 = arith.constant 0 : i32
    return %c0_i32, %c0_i32_0 : i32, i32
  }
  func.func @transform_4(%arg0: i32) -> (i32, i32) {
    %c0_i32 = arith.constant 0 : i32
    %c0_i32_0 = arith.constant 0 : i32
    %c0_i32_1 = arith.constant 0 : i32
    return %c0_i32, %c0_i32_0 : i32, i32
  }
  func.func @transform_5(%arg0: i32) -> (i32, i32) {
    %c0_i32 = arith.constant 0 : i32
    %c0_i32_0 = arith.constant 0 : i32
    %c0_i32_1 = arith.constant 0 : i32
    return %c0_i32, %c0_i32_0 : i32, i32
  }
}

</mosaic_0001>

<llo_original>
// kernel: tpu_custom_call.1
$region0: #{tpu_custom_call.1}
  #allocation0 [shape = 'u32[]', space=smem, size = 0x4, offset = 0x4, fixed_abs, tag = 'smem constant byte address 0x4 - core index']
  #allocation1 [shape = 'u32[144,128]{1,0:T(1,128)}', space=vmem, size = 0x12000, scoped, tag = 'internal scratch']
  %s0 = inlined_call_operand.vmem [shape: s32[2,1], index: 0, kind: input, shape index: {}]
  %s1 = inlined_call_operand.hbm [shape: f32[20,32], index: 1, kind: input, shape index: {}]
  %s2 = inlined_call_operand.hbm [shape: f32[32,128], index: 2, kind: input, shape index: {}]
  %s3 = inlined_call_operand.hbm [shape: f32[32,128], index: 3, kind: input, shape index: {}]
  %s4 = inlined_call_operand.vmem [shape: f32[1,128], index: 4, kind: input, shape index: {}]
  %s5 = inlined_call_operand.hbm [shape: f32[2,32], index: 5, kind: output, shape index: {}]
  %s6 = sld [smem:[#allocation0]]
  $region42: #{tpu_custom_call.1} parent=0
    _
  %s8 = ssub.s32 1, %s6
  %s9 = scalar_select 0, %s8, %s6
  $region1: #{tpu_custom_call.1} parent=0
    #allocation2 [shape = 'u8[12288]{0}', space=vmem, size = 0x3000, scoped, tag = 'input window, operand 1, single buffered']
    #allocation3 [shape = 's32[1]{0}', space=sflag, size = 0x4, scoped, tag = 'scoped memory for tpu_custom_call.1']
    #allocation4 [shape = 's32[1]{0}', space=sflag, size = 0x4, scoped, tag = 'scoped memory for tpu_custom_call.1']
    #allocation5 [shape = 'u8[16384]{0}', space=vmem, size = 0x4000, scoped, tag = 'input window, operand 2, single buffered']
    #allocation6 [shape = 's32[1]{0}', space=sflag, size = 0x4, scoped, tag = 'scoped memory for tpu_custom_call.1']
    #allocation7 [shape = 'u8[16384]{0}', space=vmem, size = 0x4000, scoped, tag = 'input window, operand 3, single buffered']
    #allocation8 [shape = 'u8[1024]{0}', space=vmem, size = 0x400, scoped, tag = 'output window, operand 0, single buffered']
    %10 = vsyncpa [#allocation3], 0
    %11 = vsyncpa [#allocation6], 0
    %12 = vsyncpa [#allocation4], 0
    // Predicated region
    $region2: #{tpu_custom_call.1} parent=1 // pred_check
      _
    $region3: #{tpu_custom_call.1} parent=1 // pred_check_branch
      %14 = sbr.rel (0) target = $region5
    $region4: #{tpu_custom_call.1} parent=1 // pred_region
      _
    $region5: #{tpu_custom_call.1} parent=1 // pred_fallthru
      _
    // Predicated region
    $region6: #{tpu_custom_call.1} parent=1 // pred_check
      _
    $region7: #{tpu_custom_call.1} parent=1 // pred_check_branch
      %16 = sbr.rel (0) target = $region9
    $region8: #{tpu_custom_call.1} parent=1 // pred_region
      %s18 = ssub.s32 384, 384
      %19 = vsyncadd [#allocation3], %s18
      %s20 = sshll.u32 [#allocation2], 4
      %s21 = int_to_ptr.vmem [resolvable:$true] %s20
      %26 = dma.hbm_to_vmem [thread:$0]  %s1, 384, %s21, [#allocation3], 128, 128, 8
    $region9: #{tpu_custom_call.1} parent=1 // pred_fallthru
      _
    // Predicated region
    $region10: #{tpu_custom_call.1} parent=1 // pred_check
      _
    $region11: #{tpu_custom_call.1} parent=1 // pred_check_branch
      %28 = sbr.rel (0) target = $region13
    $region12: #{tpu_custom_call.1} parent=1 // pred_region
      %s30 = ssub.s32 512, 512
      %31 = vsyncadd [#allocation6], %s30
      %s32 = sshll.u32 [#allocation5], 4
      %s33 = int_to_ptr.vmem [resolvable:$true] %s32
      %38 = dma.hbm_to_vmem [thread:$0]  %s2, 512, %s33, [#allocation6], 128, 128, 8
    $region13: #{tpu_custom_call.1} parent=1 // pred_fallthru
      _
    // Predicated region
    $region14: #{tpu_custom_call.1} parent=1 // pred_check
      _
    $region15: #{tpu_custom_call.1} parent=1 // pred_check_branch
      %40 = sbr.rel (0) target = $region17
    $region16: #{tpu_custom_call.1} parent=1 // pred_region
      %s42 = ssub.s32 512, 512
      %43 = vsyncadd [#allocation6], %s42
      %s44 = sshll.u32 [#allocation7], 4
      %s45 = int_to_ptr.vmem [resolvable:$true] %s44
      %50 = dma.hbm_to_vmem [thread:$0]  %s3, 512, %s45, [#allocation6], 128, 128, 8
    $region17: #{tpu_custom_call.1} parent=1 // pred_fallthru
      _
    // Predicated region
    $region18: #{tpu_custom_call.1} parent=1 // pred_check
      _
    $region19: #{tpu_custom_call.1} parent=1 // pred_check_branch
      %52 = sbr.rel (0) target = $region21
    $region20: #{tpu_custom_call.1} parent=1 // pred_region
      _
    $region21: #{tpu_custom_call.1} parent=1 // pred_fallthru
      _
    // Predicated region
    $region22: #{tpu_custom_call.1} parent=1 // pred_check
      _
    $region23: #{tpu_custom_call.1} parent=1 // pred_check_branch
      %54 = sbr.rel (0) target = $region25
    $region24: #{tpu_custom_call.1} parent=1 // pred_region
      %55 = dma.done [#allocation3], 384
    $region25: #{tpu_custom_call.1} parent=1 // pred_fallthru
      _
    // Predicated region
    $region26: #{tpu_custom_call.1} parent=1 // pred_check
      _
    $region27: #{tpu_custom_call.1} parent=1 // pred_check_branch
      %57 = sbr.rel (0) target = $region29
    $region28: #{tpu_custom_call.1} parent=1 // pred_region
      %58 = dma.done [#allocation6], 512
    $region29: #{tpu_custom_call.1} parent=1 // pred_fallthru
      _
    // Predicated region
    $region30: #{tpu_custom_call.1} parent=1 // pred_check
      _
    $region31: #{tpu_custom_call.1} parent=1 // pred_check_branch
      %60 = sbr.rel (0) target = $region33
    $region32: #{tpu_custom_call.1} parent=1 // pred_region
      %61 = dma.done [#allocation6], 512
    $region33: #{tpu_custom_call.1} parent=1 // pred_fallthru
      _
    %v62 = vld [vmem:[#allocation2] sm:$0xff]
    %v63 = vld [vmem:[#allocation2 + $0x8] sm:$0xff]
    %v64 = vld [vmem:[#allocation2 + $0x10] sm:$0xf]
    %v65 = vld [vmem:[#allocation5] sm:$0xff]
    %v66 = vld [vmem:[#allocation5 + $0x8] sm:$0xff]
    %v67 = vld [vmem:[#allocation5 + $0x10] sm:$0xff]
    %v68 = vld [vmem:[#allocation5 + $0x18] sm:$0xff]
    %v69 = vld [vmem:[%s4] sm:$0x1]
    %v71 = vlaneseq
    %v72 = vshrl.u32 %v71, 7
    %v73 = vsub.s32 0, %v72
    %v74 = vrot.slane %v69, %v73
    %vm76 = vcmask 261120
    %v78 = vsel %vm76, %v62, 0
    %v81 = vsel %vm76, %v63, 0
    %v84 = vsel %vm76, %v64, 0
    %86 = vmatprep.subr.mxu0 0.0
    %87 = vmatpush1.msra.mxu0 0.0
    %88 = vmatprep.subr.mxu0 0.0
    %89 = vmatpush1.msra.mxu0 0.0
    %90 = vmatprep.subr.mxu0 0.0
    %91 = vmatpush1.msra.mxu0 0.0
    %92 = vmatprep.subr.mxu0 0.0
    %93 = vmatpush1.msra.mxu0 0.0
    %94 = vmatprep.subr.mxu0 0.0
    %95 = vmatpush1.msra.mxu0 0.0
    %96 = vmatprep.subr.mxu0 0.0
    %97 = vmatpush1.msra.mxu0 0.0
    %98 = vmatprep.subr.mxu0 0.0
    %99 = vmatpush1.msra.mxu0 0.0
    %100 = vmatprep.subr.mxu0 0.0
    %101 = vmatpush1.msra.mxu0 0.0
    %102 = vmatprep.subr.mxu0 0.0
    %103 = vmatpush1.msra.mxu0 0.0
    %104 = vmatprep.subr.mxu0 0.0
    %105 = vmatpush1.msra.mxu0 0.0
    %106 = vmatprep.subr.mxu0 0.0
    %107 = vmatpush1.msra.mxu0 0.0
    %108 = vmatprep.subr.mxu0 0.0
    %109 = vmatpush1.msra.mxu0 0.0
    %110 = vmatprep.subr.mxu0 0.0
    %111 = vmatpush1.msra.mxu0 %v68
    %112 = vmatprep.subr.mxu0 0.0
    %113 = vmatpush1.msra.mxu0 %v67
    %114 = vmatprep.subr.mxu0 0.0
    %115 = vmatpush1.msra.mxu0 %v66
    %116 = vmatprep.subr.mxu0 0.0
    %117 = vmatpush1.msra.mxu0 %v65
    %118 = vmatprep.subr.mxu0 0.0
    %119 = vmatpush2.msra.mxu0 0.0
    %120 = vmatprep.subr.mxu0 0.0
    %121 = vmatpush2.msra.mxu0 0.0
    %122 = vmatprep.subr.mxu0 0.0
    %123 = vmatpush2.msra.mxu0 0.0
    %124 = vmatprep.subr.mxu0 0.0
    %125 = vmatpush2.msra.mxu0 0.0
    %126 = vmatprep.subr.mxu0 0.0
    %127 = vmatpush2.msra.mxu0 0.0
    %128 = vmatprep.subr.mxu0 0.0
    %129 = vmatpush2.msra.mxu0 0.0
    %130 = vmatprep.subr.mxu0 0.0
    %131 = vmatpush2.msra.mxu0 0.0
    %132 = vmatprep.subr.mxu0 0.0
    %133 = vmatpush2.msra.mxu0 0.0
    %134 = vmatprep.subr.mxu0 0.0
    %135 = vmatpush2.msra.mxu0 0.0
    %136 = vmatprep.subr.mxu0 0.0
    %137 = vmatpush2.msra.mxu0 0.0
    %138 = vmatprep.subr.mxu0 0.0
    %139 = vmatpush2.msra.mxu0 0.0
    %140 = vmatprep.subr.mxu0 0.0
    %141 = vmatpush2.msra.mxu0 0.0
    %142 = vmatprep.subr.mxu0 0.0
    %143 = vmatpush2.msra.mxu0 0.0
    %144 = vmatprep.subr.mxu0 0.0
    %145 = vmatpush2.msra.mxu0 0.0
    %146 = vmatprep.subr.mxu0 0.0
    %147 = vmatpush2.msra.mxu0 0.0
    %148 = vmatprep.subr.mxu0 0.0
    %149 = vmatpush2.msra.mxu0 0.0
    %150 = vmatprep.mubr.f32.mxu0 0.0
    %151 = vmatmul.mubr.f32.gmra.mxu0 %v78
    %v152 = vpop.f32.mrf.mxu0
    %v153 = vadd.f32 %v74, %v152
    %v154 = vpop.f32.mrf.mxu0
    %155 = vmatprep.mubr.f32.mxu0 0.0
    %156 = vmatmul.mubr.f32.gmra.mxu0 %v81
    %v157 = vpop.f32.mrf.mxu0
    %v158 = vadd.f32 %v74, %v157
    %v159 = vpop.f32.mrf.mxu0
    %160 = vmatprep.mubr.f32.mxu0 0.0
    %161 = vmatmul.mubr.f32.gmra.mxu0 %v84
    %v162 = vpop.f32.mrf.mxu0
    %v163 = vadd.f32 %v74, %v162
    %v164 = vpop.f32.mrf.mxu0
    %165 = vdwg.mxu0
    %v166 = vld [vmem:[#allocation7] sm:$0xff]
    %v167 = vld [vmem:[#allocation7 + $0x8] sm:$0xff]
    %v168 = vld [vmem:[#allocation7 + $0x10] sm:$0xff]
    %v169 = vld [vmem:[#allocation7 + $0x18] sm:$0xff]
    %v170 = vld [vmem:[%s0] sm:$0x3]
    %171 = vset.pattern.permute.xlu0 0
    %172 = vperm.xlu0 %171, %v170
    %v173 = vpop.permute.xlu0 %172
    %v175 = vsel %vm76, 0.0, 0
    %177 = vmatprep.subr.mxu0 0.0
    %178 = vmatpush1.msra.mxu0 0.0
    %179 = vmatprep.subr.mxu0 0.0
    %180 = vmatpush1.msra.mxu0 0.0
    %181 = vmatprep.subr.mxu0 0.0
    %182 = vmatpush1.msra.mxu0 0.0
    %183 = vmatprep.subr.mxu0 0.0
    %184 = vmatpush1.msra.mxu0 0.0
    %185 = vmatprep.subr.mxu0 0.0
    %186 = vmatpush1.msra.mxu0 0.0
    %187 = vmatprep.subr.mxu0 0.0
    %188 = vmatpush1.msra.mxu0 0.0
    %189 = vmatprep.subr.mxu0 0.0
    %190 = vmatpush1.msra.mxu0 0.0
    %191 = vmatprep.subr.mxu0 0.0
    %192 = vmatpush1.msra.mxu0 0.0
    %193 = vmatprep.subr.mxu0 0.0
    %194 = vmatpush1.msra.mxu0 0.0
    %195 = vmatprep.subr.mxu0 0.0
    %196 = vmatpush1.msra.mxu0 0.0
    %197 = vmatprep.subr.mxu0 0.0
    %198 = vmatpush1.msra.mxu0 0.0
    %199 = vmatprep.subr.mxu0 0.0
    %200 = vmatpush1.msra.mxu0 0.0
    %201 = vmatprep.subr.mxu0 0.0
    %202 = vmatpush1.msra.mxu0 %v169
    %203 = vmatprep.subr.mxu0 0.0
    %204 = vmatpush1.msra.mxu0 %v168
    %205 = vmatprep.subr.mxu0 0.0
    %206 = vmatpush1.msra.mxu0 %v167
    %207 = vmatprep.subr.mxu0 0.0
    %208 = vmatpush1.msra.mxu0 %v166
    %209 = vmatprep.subr.mxu0 0.0
    %210 = vmatpush2.msra.mxu0 0.0
    %211 = vmatprep.subr.mxu0 0.0
    %212 = vmatpush2.msra.mxu0 0.0
    %213 = vmatprep.subr.mxu0 0.0
    %214 = vmatpush2.msra.mxu0 0.0
    %215 = vmatprep.subr.mxu0 0.0
    %216 = vmatpush2.msra.mxu0 0.0
    %217 = vmatprep.subr.mxu0 0.0
    %218 = vmatpush2.msra.mxu0 0.0
    %219 = vmatprep.subr.mxu0 0.0
    %220 = vmatpush2.msra.mxu0 0.0
    %221 = vmatprep.subr.mxu0 0.0
    %222 = vmatpush2.msra.mxu0 0.0
    %223 = vmatprep.subr.mxu0 0.0
    %224 = vmatpush2.msra.mxu0 0.0
    %225 = vmatprep.subr.mxu0 0.0
    %226 = vmatpush2.msra.mxu0 0.0
    %227 = vmatprep.subr.mxu0 0.0
    %228 = vmatpush2.msra.mxu0 0.0
    %229 = vmatprep.subr.mxu0 0.0
    %230 = vmatpush2.msra.mxu0 0.0
    %231 = vmatprep.subr.mxu0 0.0
    %232 = vmatpush2.msra.mxu0 0.0
    %233 = vmatprep.subr.mxu0 0.0
    %234 = vmatpush2.msra.mxu0 0.0
    %235 = vmatprep.subr.mxu0 0.0
    %236 = vmatpush2.msra.mxu0 0.0
    %237 = vmatprep.subr.mxu0 0.0
    %238 = vmatpush2.msra.mxu0 0.0
    %239 = vmatprep.subr.mxu0 0.0
    %240 = vmatpush2.msra.mxu0 0.0
    %241 = vmatprep.mubr.f32.mxu0 0.0
    %242 = vmatmul.mubr.f32.gmra.mxu0 %v175
    %v243 = vpop.f32.mrf.mxu0
    %v244 = vadd.f32 0.0, %v243
    %v245 = vpop.f32.mrf.mxu0
    %246 = vdwg.mxu0
    %v247 = vadd.f32 %v153, %v244
    %v248 = vxor.u32 %v247, 2147483648
    %v249 = vmul.f32 %v248, 1.442695
    %v250 = vpow.pop %v249
    %v251 = vadd.f32 %v250, 1.0
    %v252 = vrcp.pop %v251
    %v253 = vmul.f32 1.0, %v252
    %v254 = vtanh.pop %v247
    %v255 = vmul.f32 %v253, 0.0
    %257 = vrot.lane.b32.xlu0 %v254, 32
    %v258 = vpop.permute.xlu0 %257
    %v260 = vmul.f32 %v253, %v258
    %262 = vrot.lane.b32.xlu0 %v260, 32
    %v263 = vpop.permute.xlu0 %262
    %v265 = vadd.f32 %v255, %v263
    %v266 = vtanh.pop %v265
    %268 = vrot.lane.b32.xlu0 %v266, 32
    %v269 = vpop.permute.xlu0 %268
    %v271 = vmul.f32 %v253, %v269
    %vm272 = vcmp.eq.s32.totalorder %v173, 0
    %v273 = vsel %vm272, %v271, 0.0
    %275 = vrot.lane.b32.xlu0 %v271, 64
    %v276 = vpop.permute.xlu0 %275
    %v277 = vsel %vm76, %v276, 0
    %279 = vmatprep.subr.mxu0 0.0
    %280 = vmatpush1.msra.mxu0 0.0
    %281 = vmatprep.subr.mxu0 0.0
    %282 = vmatpush1.msra.mxu0 0.0
    %283 = vmatprep.subr.mxu0 0.0
    %284 = vmatpush1.msra.mxu0 0.0
    %285 = vmatprep.subr.mxu0 0.0
    %286 = vmatpush1.msra.mxu0 0.0
    %287 = vmatprep.subr.mxu0 0.0
    %288 = vmatpush1.msra.mxu0 0.0
    %289 = vmatprep.subr.mxu0 0.0
    %290 = vmatpush1.msra.mxu0 0.0
    %291 = vmatprep.subr.mxu0 0.0
    %292 = vmatpush1.msra.mxu0 0.0
    %293 = vmatprep.subr.mxu0 0.0
    %294 = vmatpush1.msra.mxu0 0.0
    %295 = vmatprep.subr.mxu0 0.0
    %296 = vmatpush1.msra.mxu0 0.0
    %297 = vmatprep.subr.mxu0 0.0
    %298 = vmatpush1.msra.mxu0 0.0
    %299 = vmatprep.subr.mxu0 0.0
    %300 = vmatpush1.msra.mxu0 0.0
    %301 = vmatprep.subr.mxu0 0.0
    %302 = vmatpush1.msra.mxu0 0.0
    %303 = vmatprep.subr.mxu0 0.0
    %304 = vmatpush1.msra.mxu0 %v169
    %305 = vmatprep.subr.mxu0 0.0
    %306 = vmatpush1.msra.mxu0 %v168
    %307 = vmatprep.subr.mxu0 0.0
    %308 = vmatpush1.msra.mxu0 %v167
    %309 = vmatprep.subr.mxu0 0.0
    %310 = vmatpush1.msra.mxu0 %v166
    %311 = vmatprep.subr.mxu0 0.0
    %312 = vmatpush2.msra.mxu0 0.0
    %313 = vmatprep.subr.mxu0 0.0
    %314 = vmatpush2.msra.mxu0 0.0
    %315 = vmatprep.subr.mxu0 0.0
    %316 = vmatpush2.msra.mxu0 0.0
    %317 = vmatprep.subr.mxu0 0.0
    %318 = vmatpush2.msra.mxu0 0.0
    %319 = vmatprep.subr.mxu0 0.0
    %320 = vmatpush2.msra.mxu0 0.0
    %321 = vmatprep.subr.mxu0 0.0
    %322 = vmatpush2.msra.mxu0 0.0
    %323 = vmatprep.subr.mxu0 0.0
    %324 = vmatpush2.msra.mxu0 0.0
    %325 = vmatprep.subr.mxu0 0.0
    %326 = vmatpush2.msra.mxu0 0.0
    %327 = vmatprep.subr.mxu0 0.0
    %328 = vmatpush2.msra.mxu0 0.0
    %329 = vmatprep.subr.mxu0 0.0
    %330 = vmatpush2.msra.mxu0 0.0
    %331 = vmatprep.subr.mxu0 0.0
    %332 = vmatpush2.msra.mxu0 0.0
    %333 = vmatprep.subr.mxu0 0.0
    %334 = vmatpush2.msra.mxu0 0.0
    %335 = vmatprep.subr.mxu0 0.0
    %336 = vmatpush2.msra.mxu0 0.0
    %337 = vmatprep.subr.mxu0 0.0
    %338 = vmatpush2.msra.mxu0 0.0
    %339 = vmatprep.subr.mxu0 0.0
    %340 = vmatpush2.msra.mxu0 0.0
    %341 = vmatprep.subr.mxu0 0.0
    %342 = vmatpush2.msra.mxu0 0.0
    %343 = vmatprep.mubr.f32.mxu0 0.0
    %344 = vmatmul.mubr.f32.gmra.mxu0 %v277
    %v345 = vpop.f32.mrf.mxu0
    %v346 = vadd.f32 0.0, %v345
    %v347 = vpop.f32.mrf.mxu0
    %348 = vdwg.mxu0
    %v350 = vrot.slane %v346, 6
    %v352 = vadd.f32 %v153, %v350
    %v353 = vxor.u32 %v352, 2147483648
    %v354 = vmul.f32 %v353, 1.442695
    %v355 = vpow.pop %v354
    %v356 = vadd.f32 %v355, 1.0
    %v357 = vrcp.pop %v356
    %v358 = vmul.f32 1.0, %v357
    %v359 = vtanh.pop %v352
    %v361 = vrot.slane %v265, 6
    %v363 = vmul.f32 %v358, %v361
    %365 = vrot.lane.b32.xlu0 %v359, 32
    %v366 = vpop.permute.xlu0 %365
    %v368 = vmul.f32 %v358, %v366
    %370 = vrot.lane.b32.xlu0 %v368, 32
    %v371 = vpop.permute.xlu0 %370
    %v373 = vadd.f32 %v363, %v371
    %v374 = vtanh.pop %v373
    %376 = vrot.lane.b32.xlu0 %v374, 32
    %v377 = vpop.permute.xlu0 %376
    %v379 = vmul.f32 %v358, %v377
    %vm380 = vcmp.eq.s32.totalorder %v173, 1
    %v382 = vrot.slane %v379, 2
    %383 = vrot.lane.b32.xlu0 %v382, 64
    %v384 = vpop.permute.xlu0 %383
    %387 = vrot.lane.b32.xlu0 %v273, 64
    %v388 = vpop.permute.xlu0 %387
    %v390 = vsel %vm380, %v384, %v388
    %v391 = vsel %vm76, %v384, 0
    %393 = vmatprep.subr.mxu0 0.0
    %394 = vmatpush1.msra.mxu0 0.0
    %395 = vmatprep.subr.mxu0 0.0
    %396 = vmatpush1.msra.mxu0 0.0
    %397 = vmatprep.subr.mxu0 0.0
    %398 = vmatpush1.msra.mxu0 0.0
    %399 = vmatprep.subr.mxu0 0.0
    %400 = vmatpush1.msra.mxu0 0.0
    %401 = vmatprep.subr.mxu0 0.0
    %402 = vmatpush1.msra.mxu0 0.0
    %403 = vmatprep.subr.mxu0 0.0
    %404 = vmatpush1.msra.mxu0 0.0
    %405 = vmatprep.subr.mxu0 0.0
    %406 = vmatpush1.msra.mxu0 0.0
    %407 = vmatprep.subr.mxu0 0.0
    %408 = vmatpush1.msra.mxu0 0.0
    %409 = vmatprep.subr.mxu0 0.0
    %410 = vmatpush1.msra.mxu0 0.0
    %411 = vmatprep.subr.mxu0 0.0
    %412 = vmatpush1.msra.mxu0 0.0
    %413 = vmatprep.subr.mxu0 0.0
    %414 = vmatpush1.msra.mxu0 0.0
    %415 = vmatprep.subr.mxu0 0.0
    %416 = vmatpush1.msra.mxu0 0.0
    %417 = vmatprep.subr.mxu0 0.0
    %418 = vmatpush1.msra.mxu0 %v169
    %419 = vmatprep.subr.mxu0 0.0
    %420 = vmatpush1.msra.mxu0 %v168
    %421 = vmatprep.subr.mxu0 0.0
    %422 = vmatpush1.msra.mxu0 %v167
    %423 = vmatprep.subr.mxu0 0.0
    %424 = vmatpush1.msra.mxu0 %v166
    %425 = vmatprep.subr.mxu0 0.0
    %426 = vmatpush2.msra.mxu0 0.0
    %427 = vmatprep.subr.mxu0 0.0
    %428 = vmatpush2.msra.mxu0 0.0
    %429 = vmatprep.subr.mxu0 0.0
    %430 = vmatpush2.msra.mxu0 0.0
    %431 = vmatprep.subr.mxu0 0.0
    %432 = vmatpush2.msra.mxu0 0.0
    %433 = vmatprep.subr.mxu0 0.0
    %434 = vmatpush2.msra.mxu0 0.0
    %435 = vmatprep.subr.mxu0 0.0
    %436 = vmatpush2.msra.mxu0 0.0
    %437 = vmatprep.subr.mxu0 0.0
    %438 = vmatpush2.msra.mxu0 0.0
    %439 = vmatprep.subr.mxu0 0.0
    %440 = vmatpush2.msra.mxu0 0.0
    %441 = vmatprep.subr.mxu0 0.0
    %442 = vmatpush2.msra.mxu0 0.0
    %443 = vmatprep.subr.mxu0 0.0
    %444 = vmatpush2.msra.mxu0 0.0
    %445 = vmatprep.subr.mxu0 0.0
    %446 = vmatpush2.msra.mxu0 0.0
    %447 = vmatprep.subr.mxu0 0.0
    %448 = vmatpush2.msra.mxu0 0.0
    %449 = vmatprep.subr.mxu0 0.0
    %450 = vmatpush2.msra.mxu0 0.0
    %451 = vmatprep.subr.mxu0 0.0
    %452 = vmatpush2.msra.mxu0 0.0
    %453 = vmatprep.subr.mxu0 0.0
    %454 = vmatpush2.msra.mxu0 0.0
    %455 = vmatprep.subr.mxu0 0.0
    %456 = vmatpush2.msra.mxu0 0.0
    %457 = vmatprep.mubr.f32.mxu0 0.0
    %458 = vmatmul.mubr.f32.gmra.mxu0 %v391
    %v459 = vpop.f32.mrf.mxu0
    %v460 = vadd.f32 0.0, %v459
    %v461 = vpop.f32.mrf.mxu0
    %462 = vdwg.mxu0
    %v464 = vrot.slane %v460, 4
    %v466 = vadd.f32 %v153, %v464
    %v467 = vxor.u32 %v466, 2147483648
    %v468 = vmul.f32 %v467, 1.442695
    %v469 = vpow.pop %v468
    %v470 = vadd.f32 %v469, 1.0
    %v471 = vrcp.pop %v470
    %v472 = vmul.f32 1.0, %v471
    %v473 = vtanh.pop %v466
    %v475 = vrot.slane %v373, 6
    %v477 = vmul.f32 %v472, %v475
    %479 = vrot.lane.b32.xlu0 %v473, 32
    %v480 = vpop.permute.xlu0 %479
    %v482 = vmul.f32 %v472, %v480
    %484 = vrot.lane.b32.xlu0 %v482, 32
    %v485 = vpop.permute.xlu0 %484
    %v487 = vadd.f32 %v477, %v485
    %v488 = vtanh.pop %v487
    %490 = vrot.lane.b32.xlu0 %v488, 32
    %v491 = vpop.permute.xlu0 %490
    %v493 = vmul.f32 %v472, %v491
    %vm494 = vcmp.eq.s32.totalorder %v173, 2
    %v496 = vrot.slane %v493, 4
    %497 = vrot.lane.b32.xlu0 %v496, 64
    %v498 = vpop.permute.xlu0 %497
    %v500 = vsel %vm494, %v498, %v390
    %v501 = vsel %vm76, %v498, 0
    %503 = vmatprep.subr.mxu0 0.0
    %504 = vmatpush1.msra.mxu0 0.0
    %505 = vmatprep.subr.mxu0 0.0
    %506 = vmatpush1.msra.mxu0 0.0
    %507 = vmatprep.subr.mxu0 0.0
    %508 = vmatpush1.msra.mxu0 0.0
    %509 = vmatprep.subr.mxu0 0.0
    %510 = vmatpush1.msra.mxu0 0.0
    %511 = vmatprep.subr.mxu0 0.0
    %512 = vmatpush1.msra.mxu0 0.0
    %513 = vmatprep.subr.mxu0 0.0
    %514 = vmatpush1.msra.mxu0 0.0
    %515 = vmatprep.subr.mxu0 0.0
    %516 = vmatpush1.msra.mxu0 0.0
    %517 = vmatprep.subr.mxu0 0.0
    %518 = vmatpush1.msra.mxu0 0.0
    %519 = vmatprep.subr.mxu0 0.0
    %520 = vmatpush1.msra.mxu0 0.0
    %521 = vmatprep.subr.mxu0 0.0
    %522 = vmatpush1.msra.mxu0 0.0
    %523 = vmatprep.subr.mxu0 0.0
    %524 = vmatpush1.msra.mxu0 0.0
    %525 = vmatprep.subr.mxu0 0.0
    %526 = vmatpush1.msra.mxu0 0.0
    %527 = vmatprep.subr.mxu0 0.0
    %528 = vmatpush1.msra.mxu0 %v169
    %529 = vmatprep.subr.mxu0 0.0
    %530 = vmatpush1.msra.mxu0 %v168
    %531 = vmatprep.subr.mxu0 0.0
    %532 = vmatpush1.msra.mxu0 %v167
    %533 = vmatprep.subr.mxu0 0.0
    %534 = vmatpush1.msra.mxu0 %v166
    %535 = vmatprep.subr.mxu0 0.0
    %536 = vmatpush2.msra.mxu0 0.0
    %537 = vmatprep.subr.mxu0 0.0
    %538 = vmatpush2.msra.mxu0 0.0
    %539 = vmatprep.subr.mxu0 0.0
    %540 = vmatpush2.msra.mxu0 0.0
    %541 = vmatprep.subr.mxu0 0.0
    %542 = vmatpush2.msra.mxu0 0.0
    %543 = vmatprep.subr.mxu0 0.0
    %544 = vmatpush2.msra.mxu0 0.0
    %545 = vmatprep.subr.mxu0 0.0
    %546 = vmatpush2.msra.mxu0 0.0
    %547 = vmatprep.subr.mxu0 0.0
    %548 = vmatpush2.msra.mxu0 0.0
    %549 = vmatprep.subr.mxu0 0.0
    %550 = vmatpush2.msra.mxu0 0.0
    %551 = vmatprep.subr.mxu0 0.0
    %552 = vmatpush2.msra.mxu0 0.0
    %553 = vmatprep.subr.mxu0 0.0
    %554 = vmatpush2.msra.mxu0 0.0
    %555 = vmatprep.subr.mxu0 0.0
    %556 = vmatpush2.msra.mxu0 0.0
    %557 = vmatprep.subr.mxu0 0.0
    %558 = vmatpush2.msra.mxu0 0.0
    %559 = vmatprep.subr.mxu0 0.0
    %560 = vmatpush2.msra.mxu0 0.0
    %561 = vmatprep.subr.mxu0 0.0
    %562 = vmatpush2.msra.mxu0 0.0
    %563 = vmatprep.subr.mxu0 0.0
    %564 = vmatpush2.msra.mxu0 0.0
    %565 = vmatprep.subr.mxu0 0.0
    %566 = vmatpush2.msra.mxu0 0.0
    %567 = vmatprep.mubr.f32.mxu0 0.0
    %568 = vmatmul.mubr.f32.gmra.mxu0 %v501
    %v569 = vpop.f32.mrf.mxu0
    %v570 = vadd.f32 0.0, %v569
    %v571 = vpop.f32.mrf.mxu0
    %572 = vdwg.mxu0
    %v574 = vrot.slane %v570, 2
    %v576 = vadd.f32 %v153, %v574
    %v577 = vxor.u32 %v576, 2147483648
    %v578 = vmul.f32 %v577, 1.442695
    %v579 = vpow.pop %v578
    %v580 = vadd.f32 %v579, 1.0
    %v581 = vrcp.pop %v580
    %v582 = vmul.f32 1.0, %v581
    %v583 = vtanh.pop %v576
    %v585 = vrot.slane %v487, 6
    %v587 = vmul.f32 %v582, %v585
    %589 = vrot.lane.b32.xlu0 %v583, 32
    %v590 = vpop.permute.xlu0 %589
    %v592 = vmul.f32 %v582, %v590
    %594 = vrot.lane.b32.xlu0 %v592, 32
    %v595 = vpop.permute.xlu0 %594
    %v597 = vadd.f32 %v587, %v595
    %v598 = vtanh.pop %v597
    %600 = vrot.lane.b32.xlu0 %v598, 32
    %v601 = vpop.permute.xlu0 %600
    %v603 = vmul.f32 %v582, %v601
    %vm604 = vcmp.eq.s32.totalorder %v173, 3
    %v606 = vrot.slane %v603, 6
    %607 = vrot.lane.b32.xlu0 %v606, 64
    %v608 = vpop.permute.xlu0 %607
    %v610 = vsel %vm604, %v608, %v500
    %v611 = vsel %vm76, %v608, 0
    %613 = vmatprep.subr.mxu0 0.0
    %614 = vmatpush1.msra.mxu0 0.0
    %615 = vmatprep.subr.mxu0 0.0
    %616 = vmatpush1.msra.mxu0 0.0
    %617 = vmatprep.subr.mxu0 0.0
    %618 = vmatpush1.msra.mxu0 0.0
    %619 = vmatprep.subr.mxu0 0.0
    %620 = vmatpush1.msra.mxu0 0.0
    %621 = vmatprep.subr.mxu0 0.0
    %622 = vmatpush1.msra.mxu0 0.0
    %623 = vmatprep.subr.mxu0 0.0
    %624 = vmatpush1.msra.mxu0 0.0
    %625 = vmatprep.subr.mxu0 0.0
    %626 = vmatpush1.msra.mxu0 0.0
    %627 = vmatprep.subr.mxu0 0.0
    %628 = vmatpush1.msra.mxu0 0.0
    %629 = vmatprep.subr.mxu0 0.0
    %630 = vmatpush1.msra.mxu0 0.0
    %631 = vmatprep.subr.mxu0 0.0
    %632 = vmatpush1.msra.mxu0 0.0
    %633 = vmatprep.subr.mxu0 0.0
    %634 = vmatpush1.msra.mxu0 0.0
    %635 = vmatprep.subr.mxu0 0.0
    %636 = vmatpush1.msra.mxu0 0.0
    %637 = vmatprep.subr.mxu0 0.0
    %638 = vmatpush1.msra.mxu0 %v169
    %639 = vmatprep.subr.mxu0 0.0
    %640 = vmatpush1.msra.mxu0 %v168
    %641 = vmatprep.subr.mxu0 0.0
    %642 = vmatpush1.msra.mxu0 %v167
    %643 = vmatprep.subr.mxu0 0.0
    %644 = vmatpush1.msra.mxu0 %v166
    %645 = vmatprep.subr.mxu0 0.0
    %646 = vmatpush2.msra.mxu0 0.0
    %647 = vmatprep.subr.mxu0 0.0
    %648 = vmatpush2.msra.mxu0 0.0
    %649 = vmatprep.subr.mxu0 0.0
    %650 = vmatpush2.msra.mxu0 0.0
    %651 = vmatprep.subr.mxu0 0.0
    %652 = vmatpush2.msra.mxu0 0.0
    %653 = vmatprep.subr.mxu0 0.0
    %654 = vmatpush2.msra.mxu0 0.0
    %655 = vmatprep.subr.mxu0 0.0
    %656 = vmatpush2.msra.mxu0 0.0
    %657 = vmatprep.subr.mxu0 0.0
    %658 = vmatpush2.msra.mxu0 0.0
    %659 = vmatprep.subr.mxu0 0.0
    %660 = vmatpush2.msra.mxu0 0.0
    %661 = vmatprep.subr.mxu0 0.0
    %662 = vmatpush2.msra.mxu0 0.0
    %663 = vmatprep.subr.mxu0 0.0
    %664 = vmatpush2.msra.mxu0 0.0
    %665 = vmatprep.subr.mxu0 0.0
    %666 = vmatpush2.msra.mxu0 0.0
    %667 = vmatprep.subr.mxu0 0.0
    %668 = vmatpush2.msra.mxu0 0.0
    %669 = vmatprep.subr.mxu0 0.0
    %670 = vmatpush2.msra.mxu0 0.0
    %671 = vmatprep.subr.mxu0 0.0
    %672 = vmatpush2.msra.mxu0 0.0
    %673 = vmatprep.subr.mxu0 0.0
    %674 = vmatpush2.msra.mxu0 0.0
    %675 = vmatprep.subr.mxu0 0.0
    %676 = vmatpush2.msra.mxu0 0.0
    %677 = vmatprep.mubr.f32.mxu0 0.0
    %678 = vmatmul.mubr.f32.gmra.mxu0 %v611
    %v679 = vpop.f32.mrf.mxu0
    %v680 = vadd.f32 0.0, %v679
    %v681 = vpop.f32.mrf.mxu0
    %682 = vdwg.mxu0
    %v683 = vadd.f32 %v158, %v680
    %v684 = vxor.u32 %v683, 2147483648
    %v685 = vmul.f32 %v684, 1.442695
    %v686 = vpow.pop %v685
    %v687 = vadd.f32 %v686, 1.0
    %v688 = vrcp.pop %v687
    %v689 = vmul.f32 1.0, %v688
    %v690 = vtanh.pop %v683
    %v692 = vrot.slane %v597, 6
    %v694 = vmul.f32 %v689, %v692
    %696 = vrot.lane.b32.xlu0 %v690, 32
    %v697 = vpop.permute.xlu0 %696
    %v699 = vmul.f32 %v689, %v697
    %701 = vrot.lane.b32.xlu0 %v699, 32
    %v702 = vpop.permute.xlu0 %701
    %v704 = vadd.f32 %v694, %v702
    %v705 = vtanh.pop %v704
    %707 = vrot.lane.b32.xlu0 %v705, 32
    %v708 = vpop.permute.xlu0 %707
    %v710 = vmul.f32 %v689, %v708
    %vm711 = vcmp.eq.s32.totalorder %v173, 4
    %713 = vrot.lane.b32.xlu0 %v610, 64
    %v714 = vpop.permute.xlu0 %713
    %v716 = vsel %vm711, %v710, %v714
    %718 = vrot.lane.b32.xlu0 %v710, 64
    %v719 = vpop.permute.xlu0 %718
    %v720 = vsel %vm76, %v719, 0
    %722 = vmatprep.subr.mxu0 0.0
    %723 = vmatpush1.msra.mxu0 0.0
    %724 = vmatprep.subr.mxu0 0.0
    %725 = vmatpush1.msra.mxu0 0.0
    %726 = vmatprep.subr.mxu0 0.0
    %727 = vmatpush1.msra.mxu0 0.0
    %728 = vmatprep.subr.mxu0 0.0
    %729 = vmatpush1.msra.mxu0 0.0
    %730 = vmatprep.subr.mxu0 0.0
    %731 = vmatpush1.msra.mxu0 0.0
    %732 = vmatprep.subr.mxu0 0.0
    %733 = vmatpush1.msra.mxu0 0.0
    %734 = vmatprep.subr.mxu0 0.0
    %735 = vmatpush1.msra.mxu0 0.0
    %736 = vmatprep.subr.mxu0 0.0
    %737 = vmatpush1.msra.mxu0 0.0
    %738 = vmatprep.subr.mxu0 0.0
    %739 = vmatpush1.msra.mxu0 0.0
    %740 = vmatprep.subr.mxu0 0.0
    %741 = vmatpush1.msra.mxu0 0.0
    %742 = vmatprep.subr.mxu0 0.0
    %743 = vmatpush1.msra.mxu0 0.0
    %744 = vmatprep.subr.mxu0 0.0
    %745 = vmatpush1.msra.mxu0 0.0
    %746 = vmatprep.subr.mxu0 0.0
    %747 = vmatpush1.msra.mxu0 %v169
    %748 = vmatprep.subr.mxu0 0.0
    %749 = vmatpush1.msra.mxu0 %v168
    %750 = vmatprep.subr.mxu0 0.0
    %751 = vmatpush1.msra.mxu0 %v167
    %752 = vmatprep.subr.mxu0 0.0
    %753 = vmatpush1.msra.mxu0 %v166
    %754 = vmatprep.subr.mxu0 0.0
    %755 = vmatpush2.msra.mxu0 0.0
    %756 = vmatprep.subr.mxu0 0.0
    %757 = vmatpush2.msra.mxu0 0.0
    %758 = vmatprep.subr.mxu0 0.0
    %759 = vmatpush2.msra.mxu0 0.0
    %760 = vmatprep.subr.mxu0 0.0
    %761 = vmatpush2.msra.mxu0 0.0
    %762 = vmatprep.subr.mxu0 0.0
    %763 = vmatpush2.msra.mxu0 0.0
    %764 = vmatprep.subr.mxu0 0.0
    %765 = vmatpush2.msra.mxu0 0.0
    %766 = vmatprep.subr.mxu0 0.0
    %767 = vmatpush2.msra.mxu0 0.0
    %768 = vmatprep.subr.mxu0 0.0
    %769 = vmatpush2.msra.mxu0 0.0
    %770 = vmatprep.subr.mxu0 0.0
    %771 = vmatpush2.msra.mxu0 0.0
    %772 = vmatprep.subr.mxu0 0.0
    %773 = vmatpush2.msra.mxu0 0.0
    %774 = vmatprep.subr.mxu0 0.0
    %775 = vmatpush2.msra.mxu0 0.0
    %776 = vmatprep.subr.mxu0 0.0
    %777 = vmatpush2.msra.mxu0 0.0
    %778 = vmatprep.subr.mxu0 0.0
    %779 = vmatpush2.msra.mxu0 0.0
    %780 = vmatprep.subr.mxu0 0.0
    %781 = vmatpush2.msra.mxu0 0.0
    %782 = vmatprep.subr.mxu0 0.0
    %783 = vmatpush2.msra.mxu0 0.0
    %784 = vmatprep.subr.mxu0 0.0
    %785 = vmatpush2.msra.mxu0 0.0
    %786 = vmatprep.mubr.f32.mxu0 0.0
    %787 = vmatmul.mubr.f32.gmra.mxu0 %v720
    %v788 = vpop.f32.mrf.mxu0
    %v789 = vadd.f32 0.0, %v788
    %v790 = vpop.f32.mrf.mxu0
    %791 = vdwg.mxu0
    %v793 = vrot.slane %v789, 6
    %v795 = vadd.f32 %v158, %v793
    %v796 = vxor.u32 %v795, 2147483648
    %v797 = vmul.f32 %v796, 1.442695
    %v798 = vpow.pop %v797
    %v799 = vadd.f32 %v798, 1.0
    %v800 = vrcp.pop %v799
    %v801 = vmul.f32 1.0, %v800
    %v802 = vtanh.pop %v795
    %v804 = vrot.slane %v704, 6
    %v806 = vmul.f32 %v801, %v804
    %808 = vrot.lane.b32.xlu0 %v802, 32
    %v809 = vpop.permute.xlu0 %808
    %v811 = vmul.f32 %v801, %v809
    %813 = vrot.lane.b32.xlu0 %v811, 32
    %v814 = vpop.permute.xlu0 %813
    %v816 = vadd.f32 %v806, %v814
    %v817 = vtanh.pop %v816
    %819 = vrot.lane.b32.xlu0 %v817, 32
    %v820 = vpop.permute.xlu0 %819
    %v822 = vmul.f32 %v801, %v820
    %vm823 = vcmp.eq.s32.totalorder %v173, 5
    %v825 = vrot.slane %v822, 2
    %826 = vrot.lane.b32.xlu0 %v825, 64
    %v827 = vpop.permute.xlu0 %826
    %830 = vrot.lane.b32.xlu0 %v716, 64
    %v831 = vpop.permute.xlu0 %830
    %v833 = vsel %vm823, %v827, %v831
    %v834 = vsel %vm76, %v827, 0
    %836 = vmatprep.subr.mxu0 0.0
    %837 = vmatpush1.msra.mxu0 0.0
    %838 = vmatprep.subr.mxu0 0.0
    %839 = vmatpush1.msra.mxu0 0.0
    %840 = vmatprep.subr.mxu0 0.0
    %841 = vmatpush1.msra.mxu0 0.0
    %842 = vmatprep.subr.mxu0 0.0
    %843 = vmatpush1.msra.mxu0 0.0
    %844 = vmatprep.subr.mxu0 0.0
    %845 = vmatpush1.msra.mxu0 0.0
    %846 = vmatprep.subr.mxu0 0.0
    %847 = vmatpush1.msra.mxu0 0.0
    %848 = vmatprep.subr.mxu0 0.0
    %849 = vmatpush1.msra.mxu0 0.0
    %850 = vmatprep.subr.mxu0 0.0
    %851 = vmatpush1.msra.mxu0 0.0
    %852 = vmatprep.subr.mxu0 0.0
    %853 = vmatpush1.msra.mxu0 0.0
    %854 = vmatprep.subr.mxu0 0.0
    %855 = vmatpush1.msra.mxu0 0.0
    %856 = vmatprep.subr.mxu0 0.0
    %857 = vmatpush1.msra.mxu0 0.0
    %858 = vmatprep.subr.mxu0 0.0
    %859 = vmatpush1.msra.mxu0 0.0
    %860 = vmatprep.subr.mxu0 0.0
    %861 = vmatpush1.msra.mxu0 %v169
    %862 = vmatprep.subr.mxu0 0.0
    %863 = vmatpush1.msra.mxu0 %v168
    %864 = vmatprep.subr.mxu0 0.0
    %865 = vmatpush1.msra.mxu0 %v167
    %866 = vmatprep.subr.mxu0 0.0
    %867 = vmatpush1.msra.mxu0 %v166
    %868 = vmatprep.subr.mxu0 0.0
    %869 = vmatpush2.msra.mxu0 0.0
    %870 = vmatprep.subr.mxu0 0.0
    %871 = vmatpush2.msra.mxu0 0.0
    %872 = vmatprep.subr.mxu0 0.0
    %873 = vmatpush2.msra.mxu0 0.0
    %874 = vmatprep.subr.mxu0 0.0
    %875 = vmatpush2.msra.mxu0 0.0
    %876 = vmatprep.subr.mxu0 0.0
    %877 = vmatpush2.msra.mxu0 0.0
    %878 = vmatprep.subr.mxu0 0.0
    %879 = vmatpush2.msra.mxu0 0.0
    %880 = vmatprep.subr.mxu0 0.0
    %881 = vmatpush2.msra.mxu0 0.0
    %882 = vmatprep.subr.mxu0 0.0
    %883 = vmatpush2.msra.mxu0 0.0
    %884 = vmatprep.subr.mxu0 0.0
    %885 = vmatpush2.msra.mxu0 0.0
    %886 = vmatprep.subr.mxu0 0.0
    %887 = vmatpush2.msra.mxu0 0.0
    %888 = vmatprep.subr.mxu0 0.0
    %889 = vmatpush2.msra.mxu0 0.0
    %890 = vmatprep.subr.mxu0 0.0
    %891 = vmatpush2.msra.mxu0 0.0
    %892 = vmatprep.subr.mxu0 0.0
    %893 = vmatpush2.msra.mxu0 0.0
    %894 = vmatprep.subr.mxu0 0.0
    %895 = vmatpush2.msra.mxu0 0.0
    %896 = vmatprep.subr.mxu0 0.0
    %897 = vmatpush2.msra.mxu0 0.0
    %898 = vmatprep.subr.mxu0 0.0
    %899 = vmatpush2.msra.mxu0 0.0
    %900 = vmatprep.mubr.f32.mxu0 0.0
    %901 = vmatmul.mubr.f32.gmra.mxu0 %v834
    %v902 = vpop.f32.mrf.mxu0
    %v903 = vadd.f32 0.0, %v902
    %v904 = vpop.f32.mrf.mxu0
    %905 = vdwg.mxu0
    %v907 = vrot.slane %v903, 4
    %v909 = vadd.f32 %v158, %v907
    %v910 = vxor.u32 %v909, 2147483648
    %v911 = vmul.f32 %v910, 1.442695
    %v912 = vpow.pop %v911
    %v913 = vadd.f32 %v912, 1.0
    %v914 = vrcp.pop %v913
    %v915 = vmul.f32 1.0, %v914
    %v916 = vtanh.pop %v909
    %v918 = vrot.slane %v816, 6
    %v920 = vmul.f32 %v915, %v918
    %922 = vrot.lane.b32.xlu0 %v916, 32
    %v923 = vpop.permute.xlu0 %922
    %v925 = vmul.f32 %v915, %v923
    %927 = vrot.lane.b32.xlu0 %v925, 32
    %v928 = vpop.permute.xlu0 %927
    %v930 = vadd.f32 %v920, %v928
    %v931 = vtanh.pop %v930
    %933 = vrot.lane.b32.xlu0 %v931, 32
    %v934 = vpop.permute.xlu0 %933
    %v936 = vmul.f32 %v915, %v934
    %vm937 = vcmp.eq.s32.totalorder %v173, 6
    %v939 = vrot.slane %v936, 4
    %940 = vrot.lane.b32.xlu0 %v939, 64
    %v941 = vpop.permute.xlu0 %940
    %v943 = vsel %vm937, %v941, %v833
    %v944 = vsel %vm76, %v941, 0
    %946 = vmatprep.subr.mxu0 0.0
    %947 = vmatpush1.msra.mxu0 0.0
    %948 = vmatprep.subr.mxu0 0.0
    %949 = vmatpush1.msra.mxu0 0.0
    %950 = vmatprep.subr.mxu0 0.0
    %951 = vmatpush1.msra.mxu0 0.0
    %952 = vmatprep.subr.mxu0 0.0
    %953 = vmatpush1.msra.mxu0 0.0
    %954 = vmatprep.subr.mxu0 0.0
    %955 = vmatpush1.msra.mxu0 0.0
    %956 = vmatprep.subr.mxu0 0.0
    %957 = vmatpush1.msra.mxu0 0.0
    %958 = vmatprep.subr.mxu0 0.0
    %959 = vmatpush1.msra.mxu0 0.0
    %960 = vmatprep.subr.mxu0 0.0
    %961 = vmatpush1.msra.mxu0 0.0
    %962 = vmatprep.subr.mxu0 0.0
    %963 = vmatpush1.msra.mxu0 0.0
    %964 = vmatprep.subr.mxu0 0.0
    %965 = vmatpush1.msra.mxu0 0.0
    %966 = vmatprep.subr.mxu0 0.0
    %967 = vmatpush1.msra.mxu0 0.0
    %968 = vmatprep.subr.mxu0 0.0
    %969 = vmatpush1.msra.mxu0 0.0
    %970 = vmatprep.subr.mxu0 0.0
    %971 = vmatpush1.msra.mxu0 %v169
    %972 = vmatprep.subr.mxu0 0.0
    %973 = vmatpush1.msra.mxu0 %v168
    %974 = vmatprep.subr.mxu0 0.0
    %975 = vmatpush1.msra.mxu0 %v167
    %976 = vmatprep.subr.mxu0 0.0
    %977 = vmatpush1.msra.mxu0 %v166
    %978 = vmatprep.subr.mxu0 0.0
    %979 = vmatpush2.msra.mxu0 0.0
    %980 = vmatprep.subr.mxu0 0.0
    %981 = vmatpush2.msra.mxu0 0.0
    %982 = vmatprep.subr.mxu0 0.0
    %983 = vmatpush2.msra.mxu0 0.0
    %984 = vmatprep.subr.mxu0 0.0
    %985 = vmatpush2.msra.mxu0 0.0
    %986 = vmatprep.subr.mxu0 0.0
    %987 = vmatpush2.msra.mxu0 0.0
    %988 = vmatprep.subr.mxu0 0.0
    %989 = vmatpush2.msra.mxu0 0.0
    %990 = vmatprep.subr.mxu0 0.0
    %991 = vmatpush2.msra.mxu0 0.0
    %992 = vmatprep.subr.mxu0 0.0
    %993 = vmatpush2.msra.mxu0 0.0
    %994 = vmatprep.subr.mxu0 0.0
    %995 = vmatpush2.msra.mxu0 0.0
    %996 = vmatprep.subr.mxu0 0.0
    %997 = vmatpush2.msra.mxu0 0.0
    %998 = vmatprep.subr.mxu0 0.0
    %999 = vmatpush2.msra.mxu0 0.0
    %1000 = vmatprep.subr.mxu0 0.0
    %1001 = vmatpush2.msra.mxu0 0.0
    %1002 = vmatprep.subr.mxu0 0.0
    %1003 = vmatpush2.msra.mxu0 0.0
    %1004 = vmatprep.subr.mxu0 0.0
    %1005 = vmatpush2.msra.mxu0 0.0
    %1006 = vmatprep.subr.mxu0 0.0
    %1007 = vmatpush2.msra.mxu0 0.0
    %1008 = vmatprep.subr.mxu0 0.0
    %1009 = vmatpush2.msra.mxu0 0.0
    %1010 = vmatprep.mubr.f32.mxu0 0.0
    %1011 = vmatmul.mubr.f32.gmra.mxu0 %v944
    %v1012 = vpop.f32.mrf.mxu0
    %v1013 = vadd.f32 0.0, %v1012
    %v1014 = vpop.f32.mrf.mxu0
    %1015 = vdwg.mxu0
    %v1017 = vrot.slane %v1013, 2
    %v1019 = vadd.f32 %v158, %v1017
    %v1020 = vxor.u32 %v1019, 2147483648
    %v1021 = vmul.f32 %v1020, 1.442695
    %v1022 = vpow.pop %v1021
    %v1023 = vadd.f32 %v1022, 1.0
    %v1024 = vrcp.pop %v1023
    %v1025 = vmul.f32 1.0, %v1024
    %v1026 = vtanh.pop %v1019
    %v1028 = vrot.slane %v930, 6
    %v1030 = vmul.f32 %v1025, %v1028
    %1032 = vrot.lane.b32.xlu0 %v1026, 32
    %v1033 = vpop.permute.xlu0 %1032
    %v1035 = vmul.f32 %v1025, %v1033
    %1037 = vrot.lane.b32.xlu0 %v1035, 32
    %v1038 = vpop.permute.xlu0 %1037
    %v1040 = vadd.f32 %v1030, %v1038
    %v1041 = vtanh.pop %v1040
    %1043 = vrot.lane.b32.xlu0 %v1041, 32
    %v1044 = vpop.permute.xlu0 %1043
    %v1046 = vmul.f32 %v1025, %v1044
    %vm1047 = vcmp.eq.s32.totalorder %v173, 7
    %v1049 = vrot.slane %v1046, 6
    %1050 = vrot.lane.b32.xlu0 %v1049, 64
    %v1051 = vpop.permute.xlu0 %1050
    %v1053 = vsel %vm1047, %v1051, %v943
    %v1054 = vsel %vm76, %v1051, 0
    %1056 = vmatprep.subr.mxu0 0.0
    %1057 = vmatpush1.msra.mxu0 0.0
    %1058 = vmatprep.subr.mxu0 0.0
    %1059 = vmatpush1.msra.mxu0 0.0
    %1060 = vmatprep.subr.mxu0 0.0
    %1061 = vmatpush1.msra.mxu0 0.0
    %1062 = vmatprep.subr.mxu0 0.0
    %1063 = vmatpush1.msra.mxu0 0.0
    %1064 = vmatprep.subr.mxu0 0.0
    %1065 = vmatpush1.msra.mxu0 0.0
    %1066 = vmatprep.subr.mxu0 0.0
    %1067 = vmatpush1.msra.mxu0 0.0
    %1068 = vmatprep.subr.mxu0 0.0
    %1069 = vmatpush1.msra.mxu0 0.0
    %1070 = vmatprep.subr.mxu0 0.0
    %1071 = vmatpush1.msra.mxu0 0.0
    %1072 = vmatprep.subr.mxu0 0.0
    %1073 = vmatpush1.msra.mxu0 0.0
    %1074 = vmatprep.subr.mxu0 0.0
    %1075 = vmatpush1.msra.mxu0 0.0
    %1076 = vmatprep.subr.mxu0 0.0
    %1077 = vmatpush1.msra.mxu0 0.0
    %1078 = vmatprep.subr.mxu0 0.0
    %1079 = vmatpush1.msra.mxu0 0.0
    %1080 = vmatprep.subr.mxu0 0.0
    %1081 = vmatpush1.msra.mxu0 %v169
    %1082 = vmatprep.subr.mxu0 0.0
    %1083 = vmatpush1.msra.mxu0 %v168
    %1084 = vmatprep.subr.mxu0 0.0
    %1085 = vmatpush1.msra.mxu0 %v167
    %1086 = vmatprep.subr.mxu0 0.0
    %1087 = vmatpush1.msra.mxu0 %v166
    %1088 = vmatprep.subr.mxu0 0.0
    %1089 = vmatpush2.msra.mxu0 0.0
    %1090 = vmatprep.subr.mxu0 0.0
    %1091 = vmatpush2.msra.mxu0 0.0
    %1092 = vmatprep.subr.mxu0 0.0
    %1093 = vmatpush2.msra.mxu0 0.0
    %1094 = vmatprep.subr.mxu0 0.0
    %1095 = vmatpush2.msra.mxu0 0.0
    %1096 = vmatprep.subr.mxu0 0.0
    %1097 = vmatpush2.msra.mxu0 0.0
    %1098 = vmatprep.subr.mxu0 0.0
    %1099 = vmatpush2.msra.mxu0 0.0
    %1100 = vmatprep.subr.mxu0 0.0
    %1101 = vmatpush2.msra.mxu0 0.0
    %1102 = vmatprep.subr.mxu0 0.0
    %1103 = vmatpush2.msra.mxu0 0.0
    %1104 = vmatprep.subr.mxu0 0.0
    %1105 = vmatpush2.msra.mxu0 0.0
    %1106 = vmatprep.subr.mxu0 0.0
    %1107 = vmatpush2.msra.mxu0 0.0
    %1108 = vmatprep.subr.mxu0 0.0
    %1109 = vmatpush2.msra.mxu0 0.0
    %1110 = vmatprep.subr.mxu0 0.0
    %1111 = vmatpush2.msra.mxu0 0.0
    %1112 = vmatprep.subr.mxu0 0.0
    %1113 = vmatpush2.msra.mxu0 0.0
    %1114 = vmatprep.subr.mxu0 0.0
    %1115 = vmatpush2.msra.mxu0 0.0
    %1116 = vmatprep.subr.mxu0 0.0
    %1117 = vmatpush2.msra.mxu0 0.0
    %1118 = vmatprep.subr.mxu0 0.0
    %1119 = vmatpush2.msra.mxu0 0.0
    %1120 = vmatprep.mubr.f32.mxu0 0.0
    %1121 = vmatmul.mubr.f32.gmra.mxu0 %v1054
    %v1122 = vpop.f32.mrf.mxu0
    %v1123 = vadd.f32 0.0, %v1122
    %v1124 = vpop.f32.mrf.mxu0
    %1125 = vdwg.mxu0
    %v1126 = vadd.f32 %v163, %v1123
    %v1127 = vxor.u32 %v1126, 2147483648
    %v1128 = vmul.f32 %v1127, 1.442695
    %v1129 = vpow.pop %v1128
    %v1130 = vadd.f32 %v1129, 1.0
    %v1131 = vrcp.pop %v1130
    %v1132 = vmul.f32 1.0, %v1131
    %v1133 = vtanh.pop %v1126
    %v1135 = vrot.slane %v1040, 6
    %v1137 = vmul.f32 %v1132, %v1135
    %1139 = vrot.lane.b32.xlu0 %v1133, 32
    %v1140 = vpop.permute.xlu0 %1139
    %v1142 = vmul.f32 %v1132, %v1140
    %1144 = vrot.lane.b32.xlu0 %v1142, 32
    %v1145 = vpop.permute.xlu0 %1144
    %v1147 = vadd.f32 %v1137, %v1145
    %v1148 = vtanh.pop %v1147
    %1150 = vrot.lane.b32.xlu0 %v1148, 32
    %v1151 = vpop.permute.xlu0 %1150
    %v1153 = vmul.f32 %v1132, %v1151
    %vm1154 = vcmp.eq.s32.totalorder %v173, 8
    %1156 = vrot.lane.b32.xlu0 %v1053, 64
    %v1157 = vpop.permute.xlu0 %1156
    %v1159 = vsel %vm1154, %v1153, %v1157
    %1161 = vrot.lane.b32.xlu0 %v1153, 64
    %v1162 = vpop.permute.xlu0 %1161
    %v1163 = vsel %vm76, %v1162, 0
    %1165 = vmatprep.subr.mxu0 0.0
    %1166 = vmatpush1.msra.mxu0 0.0
    %1167 = vmatprep.subr.mxu0 0.0
    %1168 = vmatpush1.msra.mxu0 0.0
    %1169 = vmatprep.subr.mxu0 0.0
    %1170 = vmatpush1.msra.mxu0 0.0
    %1171 = vmatprep.subr.mxu0 0.0
    %1172 = vmatpush1.msra.mxu0 0.0
    %1173 = vmatprep.subr.mxu0 0.0
    %1174 = vmatpush1.msra.mxu0 0.0
    %1175 = vmatprep.subr.mxu0 0.0
    %1176 = vmatpush1.msra.mxu0 0.0
    %1177 = vmatprep.subr.mxu0 0.0
    %1178 = vmatpush1.msra.mxu0 0.0
    %1179 = vmatprep.subr.mxu0 0.0
    %1180 = vmatpush1.msra.mxu0 0.0
    %1181 = vmatprep.subr.mxu0 0.0
    %1182 = vmatpush1.msra.mxu0 0.0
    %1183 = vmatprep.subr.mxu0 0.0
    %1184 = vmatpush1.msra.mxu0 0.0
    %1185 = vmatprep.subr.mxu0 0.0
    %1186 = vmatpush1.msra.mxu0 0.0
    %1187 = vmatprep.subr.mxu0 0.0
    %1188 = vmatpush1.msra.mxu0 0.0
    %1189 = vmatprep.subr.mxu0 0.0
    %1190 = vmatpush1.msra.mxu0 %v169
    %1191 = vmatprep.subr.mxu0 0.0
    %1192 = vmatpush1.msra.mxu0 %v168
    %1193 = vmatprep.subr.mxu0 0.0
    %1194 = vmatpush1.msra.mxu0 %v167
    %1195 = vmatprep.subr.mxu0 0.0
    %1196 = vmatpush1.msra.mxu0 %v166
    %1197 = vmatprep.subr.mxu0 0.0
    %1198 = vmatpush2.msra.mxu0 0.0
    %1199 = vmatprep.subr.mxu0 0.0
    %1200 = vmatpush2.msra.mxu0 0.0
    %1201 = vmatprep.subr.mxu0 0.0
    %1202 = vmatpush2.msra.mxu0 0.0
    %1203 = vmatprep.subr.mxu0 0.0
    %1204 = vmatpush2.msra.mxu0 0.0
    %1205 = vmatprep.subr.mxu0 0.0
    %1206 = vmatpush2.msra.mxu0 0.0
    %1207 = vmatprep.subr.mxu0 0.0
    %1208 = vmatpush2.msra.mxu0 0.0
    %1209 = vmatprep.subr.mxu0 0.0
    %1210 = vmatpush2.msra.mxu0 0.0
    %1211 = vmatprep.subr.mxu0 0.0
    %1212 = vmatpush2.msra.mxu0 0.0
    %1213 = vmatprep.subr.mxu0 0.0
    %1214 = vmatpush2.msra.mxu0 0.0
    %1215 = vmatprep.subr.mxu0 0.0
    %1216 = vmatpush2.msra.mxu0 0.0
    %1217 = vmatprep.subr.mxu0 0.0
    %1218 = vmatpush2.msra.mxu0 0.0
    %1219 = vmatprep.subr.mxu0 0.0
    %1220 = vmatpush2.msra.mxu0 0.0
    %1221 = vmatprep.subr.mxu0 0.0
    %1222 = vmatpush2.msra.mxu0 0.0
    %1223 = vmatprep.subr.mxu0 0.0
    %1224 = vmatpush2.msra.mxu0 0.0
    %1225 = vmatprep.subr.mxu0 0.0
    %1226 = vmatpush2.msra.mxu0 0.0
    %1227 = vmatprep.subr.mxu0 0.0
    %1228 = vmatpush2.msra.mxu0 0.0
    %1229 = vmatprep.mubr.f32.mxu0 0.0
    %1230 = vmatmul.mubr.f32.gmra.mxu0 %v1163
    %v1231 = vpop.f32.mrf.mxu0
    %v1232 = vadd.f32 0.0, %v1231
    %v1233 = vpop.f32.mrf.mxu0
    %1234 = vdwg.mxu0
    %v1236 = vrot.slane %v1232, 6
    %v1238 = vadd.f32 %v163, %v1236
    %v1239 = vxor.u32 %v1238, 2147483648
    %v1240 = vmul.f32 %v1239, 1.442695
    %v1241 = vpow.pop %v1240
    %v1242 = vadd.f32 %v1241, 1.0
    %v1243 = vrcp.pop %v1242
    %v1244 = vmul.f32 1.0, %v1243
    %v1245 = vtanh.pop %v1238
    %v1247 = vrot.slane %v1147, 6
    %v1249 = vmul.f32 %v1244, %v1247
    %1251 = vrot.lane.b32.xlu0 %v1245, 32
    %v1252 = vpop.permute.xlu0 %1251
    %v1254 = vmul.f32 %v1244, %v1252
    %1256 = vrot.lane.b32.xlu0 %v1254, 32
    %v1257 = vpop.permute.xlu0 %1256
    %v1259 = vadd.f32 %v1249, %v1257
    %v1260 = vtanh.pop %v1259
    %1262 = vrot.lane.b32.xlu0 %v1260, 32
    %v1263 = vpop.permute.xlu0 %1262
    %v1265 = vmul.f32 %v1244, %v1263
    %vm1266 = vcmp.eq.s32.totalorder %v173, 9
    %v1268 = vrot.slane %v1265, 2
    %1269 = vrot.lane.b32.xlu0 %v1268, 64
    %v1270 = vpop.permute.xlu0 %1269
    %1273 = vrot.lane.b32.xlu0 %v1159, 64
    %v1274 = vpop.permute.xlu0 %1273
    %v1276 = vsel %vm1266, %v1270, %v1274
    %vm1277 = vcmask 254976
    %1278 = vst.msk [vmem:[#allocation8] sm:$0x3] %vm1277, %v1276
    // Predicated region
    $region34: #{tpu_custom_call.1} parent=1 // pred_check
      _
    $region35: #{tpu_custom_call.1} parent=1 // pred_check_branch
      %1280 = sbr.rel (0) target = $region37
    $region36: #{tpu_custom_call.1} parent=1 // pred_region
      %s1282 = ssub.s32 32, 32
      %1283 = vsyncadd [#allocation4], %s1282
      %s1285 = sshll.u32 [#allocation8], 4
      %s1286 = int_to_ptr.vmem [resolvable:$true] %s1285
      %1288 = dma.vmem_to_hbm [thread:$0]  %s1286, 32, %s5, [#allocation4]
    $region37: #{tpu_custom_call.1} parent=1 // pred_fallthru
      _
    // Predicated region
    $region38: #{tpu_custom_call.1} parent=1 // pred_check
      _
    $region39: #{tpu_custom_call.1} parent=1 // pred_check_branch
      %1290 = sbr.rel (0) target = $region41
    $region40: #{tpu_custom_call.1} parent=1 // pred_region
      %1291 = dma.done [#allocation4], 32
    $region41: #{tpu_custom_call.1} parent=1 // pred_fallthru
      _
    %1292 = vsyncpa [#allocation3], 1
    %1293 = vsyncpa [#allocation6], 1
    %1294 = vsyncpa [#allocation4], 1

</llo_original>
